<compile_context>
chip_gen: v7x
topology: tpu7x:2x2x1
jax: 0.10.0
libtpu: 0.0.40
codegen_flags: <defaults>
</compile_context>

<pallas_src>
import functools
import math

import numpy as np
import jax
import jax.numpy as jnp
from jax import lax
from jax.experimental import pallas as pl
from jax.experimental.pallas import tpu as pltpu


N_FFT = 512
HOP = 256
N_FREQ = N_FFT // 2 + 1   # 257 onesided bins
N_BINS = N_FFT // 2       # 256 bins handled directly by the matmul


def _build_basis_np():
    """(512, 512) float32 fused window*DFT basis: rows = output bins, cols = taps."""
    n = np.arange(N_FFT)
    k = np.arange(N_BINS)
    # torch.hann_window(512) is periodic: 0.5*(1 - cos(2*pi*n/N)); the module uses its sqrt.
    window = np.sqrt(0.5 * (1.0 - np.cos(2.0 * np.pi * n / N_FFT)))               # float64
    # Integer phase mod N_FFT keeps trig arguments in [0, 2*pi) -> full f64 accuracy.
    phase = 2.0 * np.pi * ((np.outer(k, n) % N_FFT).astype(np.float64)) / N_FFT
    real_rows = window[None, :] * np.cos(phase)                                   # (256, 512)
    imag_rows = -window[None, :] * np.sin(phase)                                  # (256, 512)
    # imag(DC) == 0 always; reuse that row for the Nyquist real row:
    #   X[256] = sum_n w[n] * x[n] * (-1)^n
    imag_rows[0, :] = window * (1.0 - 2.0 * (n % 2))
    return np.concatenate([real_rows, imag_rows], axis=0).astype(np.float32)      # (512, 512)


_BASIS_NP = _build_basis_np()   # host-side constant, built once at import


def _stft_kernel(frames_ref, basis_ref, out_ref):
    # frames_ref: (tile_m, 512 taps)   basis_ref: (512 bins, 512 taps)
    # out_ref:    (512 bins, tile_m)   -- frames stay on the lane axis (lane-dense stores)
    out_ref[...] = lax.dot_general(
        basis_ref[...],
        frames_ref[...],
        dimension_numbers=(((1,), (1,)), ((), ())),   # contract the tap axis of both
        preferred_element_type=jnp.float32,
    )


@functools.partial(jax.jit, static_argnames=("tile_m", "compute_dtype", "torch_layout"))
def stft_encoder(mix, tile_m=1024, compute_dtype=jnp.float32, torch_layout=True):
    """mix: (B, T) float32 -> (B, 257, n_frames, 2) float32 (torch.stft layout).

    torch_layout=False returns the packed kernel-native (B, 512, n_frames) spectrogram
    (rows 0..256 = real bins incl. Nyquist, rows 257..511 = imag bins 1..255).
    """
    mix = mix.astype(jnp.float32)
    B, T = mix.shape
    assert T > N_FFT // 2, "reflect padding of n_fft//2 needs T > n_fft//2"

    # ---- center=True, pad_mode='reflect'
    padded = jnp.pad(mix, ((0, 0), (N_FFT // 2, N_FFT // 2)), mode="reflect")
    t_pad = T + N_FFT
    n_frames = 1 + (t_pad - N_FFT) // HOP

    # ---- frame tiling: lane-dense (multiple of 128), clamped so per-batch padding waste
    # is bounded by < 128 frames.
    tile_m = max(128, (int(tile_m) // 128) * 128)
    tile_m = min(tile_m, pl.cdiv(n_frames, 128) * 128)
    f_pad = pl.cdiv(n_frames, tile_m) * tile_m
    m_tiles = f_pad // tile_m

    # ---- pad on the 1x-audio time axis (NOT on the materialized 2x-audio frames buffer).
    need = (f_pad + 1) * HOP
    padded = jnp.pad(padded, ((0, 0), (0, max(0, need - t_pad))))[:, :need]
    padded = padded.astype(compute_dtype)

    # ---- framing WITHOUT a gather: hop == n_fft/2, each frame = two adjacent 256-chunks.
    chunks = padded.reshape(B, f_pad + 1, HOP)
    frames = jnp.concatenate([chunks[:, :-1, :], chunks[:, 1:, :]], axis=-1)   # (B, f_pad, 512)

    basis = jnp.asarray(_BASIS_NP, dtype=compute_dtype)                        # (512, 512) const

    itemsize = jnp.dtype(compute_dtype).itemsize
    cost = pl.CostEstimate(
        flops=2 * (2 * N_BINS) * N_FFT * B * f_pad,
        transcendentals=0,
        bytes_accessed=(B * f_pad * N_FFT * itemsize            # frames read
                        + (2 * N_BINS) * N_FFT * itemsize       # basis read
                        + B * (2 * N_BINS) * f_pad * 4),        # spectrogram write
    )

    # Double-buffered per-step VMEM estimate; bump the scoped limit only if a big tile was
    # requested (v5e's default scoped limit is ~16 MiB).
    vmem_needed = (2 * tile_m * N_FFT * itemsize            # frames tile x2
                   + 2 * (2 * N_BINS) * tile_m * 4          # output tile x2
                   + 2 * (2 * N_BINS) * N_FFT * itemsize)   # basis x2
    compiler_kwargs = dict(dimension_semantics=("parallel", "parallel"))
    if vmem_needed > 14 * 1024 * 1024:
        compiler_kwargs["vmem_limit_bytes"] = min(vmem_needed + (8 << 20), 56 << 20)

    out = pl.pallas_call(
        _stft_kernel,
        out_shape=jax.ShapeDtypeStruct((B, 2 * N_BINS, f_pad), jnp.float32),
        grid=(B, m_tiles),
        in_specs=[
            pl.BlockSpec((None, tile_m, N_FFT), lambda b, m: (b, m, 0)),     # frames tile
            pl.BlockSpec((2 * N_BINS, N_FFT), lambda b, m: (0, 0)),          # constant basis
        ],
        out_specs=pl.BlockSpec((None, 2 * N_BINS, tile_m), lambda b, m: (b, 0, m)),
        compiler_params=pltpu.CompilerParams(**compiler_kwargs),
        cost_estimate=cost,
    )(frames, basis)                                                          # (B, 512, f_pad)

    out = out[:, :, :n_frames]                                                # drop pad frames
    if not torch_layout:
        return out                                                            # packed layout

    # ---- thin API-boundary epilogue: torch.stft's (B, 257, n_frames, 2) layout.
    real = out[:, :N_FREQ, :]                               # bins 0..255 + Nyquist (row 256)
    zeros = jnp.zeros((B, 1, n_frames), jnp.float32)
    imag = jnp.concatenate([zeros, out[:, N_FREQ:, :], zeros], axis=1)
    return jnp.stack([real, imag], axis=-1)


def _stft_reference(mix):
    """Pure-JAX reference (same math, no Pallas) for the correctness check."""
    mix = mix.astype(jnp.float32)
    padded = jnp.pad(mix, ((0, 0), (N_FFT // 2, N_FFT // 2)), mode="reflect")
    n_frames = 1 + (padded.shape[1] - N_FFT) // HOP
    idx = jnp.arange(n_frames)[:, None] * HOP + jnp.arange(N_FFT)[None, :]
    frames = padded[:, idx]                                        # (B, F, 512)
    n = jnp.arange(N_FFT, dtype=jnp.float32)
    window = jnp.sqrt(0.5 * (1.0 - jnp.cos(2.0 * math.pi * n / N_FFT)))
    xw = frames * window[None, None, :]
    spec_c = jnp.fft.rfft(xw, n=N_FFT, axis=-1)                    # (B, F, 257)
    real = jnp.real(spec_c)
    imag = jnp.imag(spec_c)
    return jnp.stack(
        [jnp.transpose(real, (0, 2, 1)), jnp.transpose(imag, (0, 2, 1))], axis=-1
    )


if __name__ == "__main__":
    key = jax.random.PRNGKey(0)
    B, T = 2, 2048           # 2 signals of 2048 samples -> 9 frames x 257 freq bins
    mix = jax.random.normal(key, (B, T), dtype=jnp.float32)

    out = stft_encoder(mix)
    out = jax.block_until_ready(out)

    ref = _stft_reference(mix)
    assert out.shape == (B, N_FREQ, 1 + T // HOP, 2), out.shape
    assert jnp.allclose(out, ref, atol=2e-3, rtol=1e-3), float(
        jnp.max(jnp.abs(out - ref))
    )
    print("KERNEL_OK")
</pallas_src>

<mosaic_0001>
module attributes {stable_mosaic.version = 11 : i64} {
  func.func @_stft_kernel(%arg0: i32, %arg1: i32, %arg2: memref<1x128x512xf32, #tpu.memory_space<vmem>>, %arg3: memref<512x512xf32, #tpu.memory_space<vmem>>, %arg4: memref<1x512x128xf32, #tpu.memory_space<vmem>>) attributes {dimension_semantics = [#tpu.dimension_semantics<parallel>, #tpu.dimension_semantics<parallel>], iteration_bounds = array<i64: 2, 1>, scalar_prefetch = 0 : i64, scratch_operands = 0 : i64, tpu.core_type = #tpu.core_type<tc>, window_params = [{transform_indices = @transform_0, window_bounds = array<i64: 1, 128, 512>}, {pipeline_mode = #tpu.pipeline_mode<synchronous>, transform_indices = @transform_1, window_bounds = array<i64: 512, 512>}, {transform_indices = @transform_2, window_bounds = array<i64: 1, 512, 128>}]} {
    %c0 = arith.constant 0 : index
    %c0_0 = arith.constant 0 : index
    %0 = vector.load %arg3[%c0, %c0_0] : memref<512x512xf32, #tpu.memory_space<vmem>>, vector<512x512xf32>
    %c0_1 = arith.constant 0 : index
    %c0_2 = arith.constant 0 : index
    %c0_3 = arith.constant 0 : index
    %1 = vector.load %arg2[%c0_1, %c0_2, %c0_3] : memref<1x128x512xf32, #tpu.memory_space<vmem>>, vector<1x128x512xf32>
    %2 = vector.shape_cast %1 : vector<1x128x512xf32> to vector<128x512xf32>
    %cst = arith.constant dense<0.000000e+00> : vector<512x128xf32>
    %3 = tpu.matmul %0, %2, %cst {dimension_numbers = #tpu.dot_dimension_numbers<[1], [1], [0], [0], [0, 0, 1, 0], [], []>} : vector<512x512xf32>, vector<128x512xf32>, vector<512x128xf32> -> vector<512x128xf32>
    %c0_4 = arith.constant 0 : index
    %c0_5 = arith.constant 0 : index
    %c0_6 = arith.constant 0 : index
    %4 = vector.load %arg4[%c0_4, %c0_5, %c0_6] : memref<1x512x128xf32, #tpu.memory_space<vmem>>, vector<1x512x128xf32>
    %5 = vector.shape_cast %4 : vector<1x512x128xf32> to vector<512x128xf32>
    %6 = vector.shape_cast %3 : vector<512x128xf32> to vector<1x512x128xf32>
    tpu.vector_store %arg4[%c0_4, %c0_5, %c0_6], %6 {strides = array<i32>} : memref<1x512x128xf32, #tpu.memory_space<vmem>>, vector<1x512x128xf32>,
    return
  }
  func.func @transform_0(%arg0: i32, %arg1: i32) -> (i32, i32, i32) {
    %c0_i32 = arith.constant 0 : i32
    %c0_i32_0 = arith.constant 0 : i32
    return %arg0, %arg1, %c0_i32 : i32, i32, i32
  }
  func.func @transform_1(%arg0: i32, %arg1: i32) -> (i32, i32) {
    %c0_i32 = arith.constant 0 : i32
    %c0_i32_0 = arith.constant 0 : i32
    %c0_i32_1 = arith.constant 0 : i32
    return %c0_i32, %c0_i32_0 : i32, i32
  }
  func.func @transform_2(%arg0: i32, %arg1: i32) -> (i32, i32, i32) {
    %c0_i32 = arith.constant 0 : i32
    %c0_i32_0 = arith.constant 0 : i32
    return %arg0, %c0_i32, %arg1 : i32, i32, i32
  }
}

</mosaic_0001>

<llo_original>
// kernel: stft_encoder.1
$region0: #{stft_encoder.1}
  #allocation0 [shape = 'u32[]', space=smem, size = 0x4, offset = 0x4, fixed_abs, tag = 'smem constant byte address 0x4 - core index']
  #allocation1 [shape = 'u32[144,128]{1,0:T(1,128)}', space=vmem, size = 0x12000, scoped, tag = 'internal scratch']
  %s0 = inlined_call_operand.vmem [shape: f32[2,128,512], index: 0, kind: input, shape index: {}]
  %s1 = inlined_call_operand.vmem [shape: f32[512,512], index: 1, kind: input, shape index: {}]
  %s2 = inlined_call_operand.vmem [shape: f32[2,512,128], index: 2, kind: output, shape index: {}]
  %s3 = sld [smem:[#allocation0]]
  $region41: #{stft_encoder.1} parent=0
    _
  %s5 = ssub.s32 1, %s3
  %s6 = scalar_select 0, %s5, %s3
  loop: start=0, step=1, limit=4
  $region2: #{stft_encoder.1} parent=0 // loop_pre_header
    _
  $region3: #{stft_encoder.1} parent=0 // loop_header
    %s8 = sphi 0, %s12
    %p9 = scmp.ge.s32.totalorder %s8, 4
    %s15 = sphi 0, %s27
    %s16 = sphi 0, %s23
    %s17 = sphi 0, %s15
    %s18 = sphi 0, %s16
    %s19 = sphi 0, %s17
    %s20 = sphi 0, %s18
    %s32 = sphi 0, %s34
    %s35 = sphi 0, %s32
    %s36 = sphi 0, %s35
    %s52 = sphi 0, %s36
    %s56 = sphi 0, %s56
    %s58 = sphi 0, %s56
    %s59 = sphi 0, %s58
    %s73 = sphi 0, %s59
    %s81 = sphi 0, %s83
    %s84 = sphi 0, %s81
    %s85 = sphi 0, %s84
    %s101 = sphi 0, %s85
  $region4: #{stft_encoder.1} parent=0 // loop_header_branch
    %11 = sbr.rel (%p9) target = $region8
  $region5: #{stft_encoder.1} parent=0 // loop_body
    %s13 = ssub.s32 %s8, 1
    %s14 = ssub.s32 %s8, 2
    %s21 = sadd.s32 1, %s16
    %p22 = scmp.ge.s32.totalorder %s21, 1
    %s23 = scalar_select %p22, 0, %s21
    %s24 = sadd.s32 1, %s15
    %s25 = scalar_select %p22, %s24, %s15
    %p26 = scmp.ge.s32.totalorder %s25, 2
    %s27 = scalar_select %p26, 0, %s25
    %s28 = ssub.s32 %s15, %s27
    %s29 = ssub.s32 %s16, %s23
    %s30 = sor.u32 %s28, %s29
    %p31 = scmp.eq.s32.totalorder %s30, 0
    %s33 = sadd.s32 %s32, 1
    %s34 = scalar_select %p31, %s32, %s33
    %p37 = pneg %p31
    %p38 = scmp.eq.s32.totalorder %s8, 1
    %p39 = por %p37, %p38
    %p40 = scmp.ne.s32.totalorder %s32, %s35
    %p41 = scmp.eq.s32.totalorder %s8, 0
    %p42 = por %p40, %p41
    %p43 = scmp.ne.s32.totalorder %s32, %s35
    %p44 = scmp.eq.s32.totalorder %s13, 1
    %p45 = por %p43, %p44
    %p46 = scmp.ne.s32.totalorder %s35, %s36
    %p47 = scmp.eq.s32.totalorder %s13, 0
    %p48 = por %p46, %p47
    %p49 = scmp.ne.s32.totalorder %s35, %s36
    %p50 = scmp.eq.s32.totalorder %s14, 1
    %p51 = por %p49, %p50
    %p53 = scmp.ne.s32.totalorder %s36, %s52
    %p54 = scmp.eq.s32.totalorder %s14, 0
    %p55 = por %p53, %p54
    %s57 = sadd.s32 %s56, 1
    %p60 = scmp.eq.s32.totalorder %s8, 1
    %p61 = scmp.ne.s32.totalorder %s56, %s58
    %p62 = scmp.eq.s32.totalorder %s8, 0
    %p63 = por %p61, %p62
    %p64 = scmp.ne.s32.totalorder %s56, %s58
    %p65 = scmp.eq.s32.totalorder %s13, 1
    %p66 = por %p64, %p65
    %p67 = scmp.ne.s32.totalorder %s58, %s59
    %p68 = scmp.eq.s32.totalorder %s13, 0
    %p69 = por %p67, %p68
    %p70 = scmp.ne.s32.totalorder %s58, %s59
    %p71 = scmp.eq.s32.totalorder %s14, 1
    %p72 = por %p70, %p71
    %p74 = scmp.ne.s32.totalorder %s59, %s73
    %p75 = scmp.eq.s32.totalorder %s14, 0
    %p76 = por %p74, %p75
    %s77 = ssub.s32 %s15, %s27
    %s78 = ssub.s32 %s16, %s23
    %s79 = sor.u32 %s77, %s78
    %p80 = scmp.eq.s32.totalorder %s79, 0
    %s82 = sadd.s32 %s81, 1
    %s83 = scalar_select %p80, %s81, %s82
    %p86 = pneg %p80
    %p87 = scmp.eq.s32.totalorder %s8, 1
    %p88 = por %p86, %p87
    %p89 = scmp.ne.s32.totalorder %s81, %s84
    %p90 = scmp.eq.s32.totalorder %s8, 0
    %p91 = por %p89, %p90
    %p92 = scmp.ne.s32.totalorder %s81, %s84
    %p93 = scmp.eq.s32.totalorder %s13, 1
    %p94 = por %p92, %p93
    %p95 = scmp.ne.s32.totalorder %s84, %s85
    %p96 = scmp.eq.s32.totalorder %s13, 0
    %p97 = por %p95, %p96
    %p98 = scmp.ne.s32.totalorder %s84, %s85
    %p99 = scmp.eq.s32.totalorder %s14, 1
    %p100 = por %p98, %p99
    %p102 = scmp.ne.s32.totalorder %s85, %s101
    %p103 = scmp.eq.s32.totalorder %s14, 0
    %p104 = por %p102, %p103
    %p105 = scmp.le.s32.totalorder 1, %s8
    %p106 = scmp.lt.s32.totalorder %s8, 3
    %p107 = pnand %p105, %p106
    %p108 = pneg %p107
    // Predicated region
    $region9: #{stft_encoder.1} parent=5 // pred_check
      _
    $region10: #{stft_encoder.1} parent=5 // pred_check_branch
      %110 = sbr.rel (%p107) target = $region12
    $region11: #{stft_encoder.1} parent=5 // pred_region
      %s111 = ssub.s32 %s8, 1
      // Predicated region
      $region13: #{stft_encoder.1} parent=11 // pred_check
        %p112 = pneg %p69
      $region14: #{stft_encoder.1} parent=11 // pred_check_branch
        %114 = sbr.rel (%p112) target = $region16
      $region15: #{stft_encoder.1} parent=11 // pred_region
        _
      $region16: #{stft_encoder.1} parent=11 // pred_fallthru
        _
    $region12: #{stft_encoder.1} parent=5 // pred_fallthru
      _
    %p115 = scmp.lt.s32.totalorder %s8, 2
    // Predicated region
    $region17: #{stft_encoder.1} parent=5 // pred_check
      %p116 = pneg %p115
    $region18: #{stft_encoder.1} parent=5 // pred_check_branch
      %118 = sbr.rel (%p116) target = $region20
    $region19: #{stft_encoder.1} parent=5 // pred_region
      // Predicated region
      $region21: #{stft_encoder.1} parent=19 // pred_check
        %p119 = pneg %p42
      $region22: #{stft_encoder.1} parent=19 // pred_check_branch
        %121 = sbr.rel (%p119) target = $region24
      $region23: #{stft_encoder.1} parent=19 // pred_region
        %s122 = smul.u32 16, %s16
        %p123 = scmp.lt.s32.totalorder %s15, 1
        %s124 = scalar_select %p123, %s15, 1
        %p125 = scmp.lt.s32.totalorder %s122, 15
        %s126 = scalar_select %p125, %s122, 15
        %s127 = smul.addr %s126, 4
        %s128 = smul.addr %s124, 64
        %s129 = sadd.s32 %s127, %s128
        %s130 = smul.addr %s129, 8
        %s131 = scalar_lea.vmem %s0, %s130
        %s132 = smul.u32 16, %s16
      $region24: #{stft_encoder.1} parent=19 // pred_fallthru
        _
    $region20: #{stft_encoder.1} parent=5 // pred_fallthru
      _
    %p133 = scmp.le.s32.totalorder 1, %s8
    %p134 = scmp.lt.s32.totalorder %s8, 3
    %p135 = pnand %p133, %p134
    %p136 = pneg %p135
    // Predicated region
    $region25: #{stft_encoder.1} parent=5 // pred_check
      _
    $region26: #{stft_encoder.1} parent=5 // pred_check_branch
      %138 = sbr.rel (%p135) target = $region28
    $region27: #{stft_encoder.1} parent=5 // pred_region
      %s139 = ssub.s32 %s8, 1
      %s140 = smul.u32 16, %s18
      %p141 = scmp.lt.s32.totalorder %s17, 1
      %s142 = scalar_select %p141, %s17, 1
      %p143 = scmp.lt.s32.totalorder %s140, 15
      %s144 = scalar_select %p143, %s140, 15
      %s145 = smul.addr %s144, 4
      %s146 = smul.addr %s142, 64
      %s147 = sadd.s32 %s145, %s146
      %s148 = smul.addr %s147, 8
      %s149 = scalar_lea.vmem %s0, %s148
      %p150 = pneg %p48
      %p151 = pneg %p45
      %p152 = pneg %p69
      %p153 = pneg %p66
      %p154 = pneg %p97
      %p155 = pneg %p94
      %p156 = scmp.lt.s32.totalorder %s17, 1
      %s157 = scalar_select %p156, %s17, 1
      %p158 = scmp.lt.s32.totalorder %s18, 0
      %s159 = scalar_select %p158, %s18, 0
      %s160 = smul.addr %s157, 64
      %s161 = sadd.s32 %s159, %s160
      %s162 = smul.addr %s161, 8
      %s163 = scalar_lea.vmem %s2, %s162
      %s164 = smul.u32 16, %s18
      %p165 = scmp.lt.s32.totalorder %s17, 1
      %s166 = scalar_select %p165, %s17, 1
      %p167 = scmp.lt.s32.totalorder %s164, 15
      %s168 = scalar_select %p167, %s164, 15
      %s169 = smul.addr %s168, 4
      %s170 = smul.addr %s166, 64
      %s171 = sadd.s32 %s169, %s170
      %s172 = smul.addr %s171, 8
      %s173 = scalar_lea.vmem %s0, %s172
      %s174 = smul.u32 16, %s18
      %p175 = scmp.lt.s32.totalorder %s17, 1
      %s176 = scalar_select %p175, %s17, 1
      %p177 = scmp.lt.s32.totalorder %s18, 0
      %s178 = scalar_select %p177, %s18, 0
      %s179 = smul.addr %s176, 64
      %s180 = sadd.s32 %s178, %s179
      %s181 = smul.addr %s180, 8
      %s182 = scalar_lea.vmem %s2, %s181
      %v183 = vld [vmem:[%s1] sm:$0xff]
      %v184 = vld [vmem:[%s1 + $0x8] sm:$0xff]
      %v185 = vld [vmem:[%s1 + $0x10] sm:$0xff]
      %v186 = vld [vmem:[%s1 + $0x18] sm:$0xff]
      %v187 = vld [vmem:[%s1 + $0x20] sm:$0xff]
      %v188 = vld [vmem:[%s1 + $0x28] sm:$0xff]
      %v189 = vld [vmem:[%s1 + $0x30] sm:$0xff]
      %v190 = vld [vmem:[%s1 + $0x38] sm:$0xff]
      %v191 = vld [vmem:[%s1 + $0x40] sm:$0xff]
      %v192 = vld [vmem:[%s1 + $0x48] sm:$0xff]
      %v193 = vld [vmem:[%s1 + $0x50] sm:$0xff]
      %v194 = vld [vmem:[%s1 + $0x58] sm:$0xff]
      %v195 = vld [vmem:[%s1 + $0x60] sm:$0xff]
      %v196 = vld [vmem:[%s1 + $0x68] sm:$0xff]
      %v197 = vld [vmem:[%s1 + $0x70] sm:$0xff]
      %v198 = vld [vmem:[%s1 + $0x78] sm:$0xff]
      %v199 = vld [vmem:[%s1 + $0x80] sm:$0xff]
      %v200 = vld [vmem:[%s1 + $0x88] sm:$0xff]
      %v201 = vld [vmem:[%s1 + $0x90] sm:$0xff]
      %v202 = vld [vmem:[%s1 + $0x98] sm:$0xff]
      %v203 = vld [vmem:[%s1 + $0xa0] sm:$0xff]
      %v204 = vld [vmem:[%s1 + $0xa8] sm:$0xff]
      %v205 = vld [vmem:[%s1 + $0xb0] sm:$0xff]
      %v206 = vld [vmem:[%s1 + $0xb8] sm:$0xff]
      %v207 = vld [vmem:[%s1 + $0xc0] sm:$0xff]
      %v208 = vld [vmem:[%s1 + $0xc8] sm:$0xff]
      %v209 = vld [vmem:[%s1 + $0xd0] sm:$0xff]
      %v210 = vld [vmem:[%s1 + $0xd8] sm:$0xff]
      %v211 = vld [vmem:[%s1 + $0xe0] sm:$0xff]
      %v212 = vld [vmem:[%s1 + $0xe8] sm:$0xff]
      %v213 = vld [vmem:[%s1 + $0xf0] sm:$0xff]
      %v214 = vld [vmem:[%s1 + $0xf8] sm:$0xff]
      %v215 = vld [vmem:[%s1 + $0x100] sm:$0xff]
      %v216 = vld [vmem:[%s1 + $0x108] sm:$0xff]
      %v217 = vld [vmem:[%s1 + $0x110] sm:$0xff]
      %v218 = vld [vmem:[%s1 + $0x118] sm:$0xff]
      %v219 = vld [vmem:[%s1 + $0x120] sm:$0xff]
      %v220 = vld [vmem:[%s1 + $0x128] sm:$0xff]
      %v221 = vld [vmem:[%s1 + $0x130] sm:$0xff]
      %v222 = vld [vmem:[%s1 + $0x138] sm:$0xff]
      %v223 = vld [vmem:[%s1 + $0x140] sm:$0xff]
      %v224 = vld [vmem:[%s1 + $0x148] sm:$0xff]
      %v225 = vld [vmem:[%s1 + $0x150] sm:$0xff]
      %v226 = vld [vmem:[%s1 + $0x158] sm:$0xff]
      %v227 = vld [vmem:[%s1 + $0x160] sm:$0xff]
      %v228 = vld [vmem:[%s1 + $0x168] sm:$0xff]
      %v229 = vld [vmem:[%s1 + $0x170] sm:$0xff]
      %v230 = vld [vmem:[%s1 + $0x178] sm:$0xff]
      %v231 = vld [vmem:[%s1 + $0x180] sm:$0xff]
      %v232 = vld [vmem:[%s1 + $0x188] sm:$0xff]
      %v233 = vld [vmem:[%s1 + $0x190] sm:$0xff]
      %v234 = vld [vmem:[%s1 + $0x198] sm:$0xff]
      %v235 = vld [vmem:[%s1 + $0x1a0] sm:$0xff]
      %v236 = vld [vmem:[%s1 + $0x1a8] sm:$0xff]
      %v237 = vld [vmem:[%s1 + $0x1b0] sm:$0xff]
      %v238 = vld [vmem:[%s1 + $0x1b8] sm:$0xff]
      %v239 = vld [vmem:[%s1 + $0x1c0] sm:$0xff]
      %v240 = vld [vmem:[%s1 + $0x1c8] sm:$0xff]
      %v241 = vld [vmem:[%s1 + $0x1d0] sm:$0xff]
      %v242 = vld [vmem:[%s1 + $0x1d8] sm:$0xff]
      %v243 = vld [vmem:[%s1 + $0x1e0] sm:$0xff]
      %v244 = vld [vmem:[%s1 + $0x1e8] sm:$0xff]
      %v245 = vld [vmem:[%s1 + $0x1f0] sm:$0xff]
      %v246 = vld [vmem:[%s1 + $0x1f8] sm:$0xff]
      %v247 = vld [vmem:[%s1 + $0x200] sm:$0xff]
      %v248 = vld [vmem:[%s1 + $0x208] sm:$0xff]
      %v249 = vld [vmem:[%s1 + $0x210] sm:$0xff]
      %v250 = vld [vmem:[%s1 + $0x218] sm:$0xff]
      %v251 = vld [vmem:[%s1 + $0x220] sm:$0xff]
      %v252 = vld [vmem:[%s1 + $0x228] sm:$0xff]
      %v253 = vld [vmem:[%s1 + $0x230] sm:$0xff]
      %v254 = vld [vmem:[%s1 + $0x238] sm:$0xff]
      %v255 = vld [vmem:[%s1 + $0x240] sm:$0xff]
      %v256 = vld [vmem:[%s1 + $0x248] sm:$0xff]
      %v257 = vld [vmem:[%s1 + $0x250] sm:$0xff]
      %v258 = vld [vmem:[%s1 + $0x258] sm:$0xff]
      %v259 = vld [vmem:[%s1 + $0x260] sm:$0xff]
      %v260 = vld [vmem:[%s1 + $0x268] sm:$0xff]
      %v261 = vld [vmem:[%s1 + $0x270] sm:$0xff]
      %v262 = vld [vmem:[%s1 + $0x278] sm:$0xff]
      %v263 = vld [vmem:[%s1 + $0x280] sm:$0xff]
      %v264 = vld [vmem:[%s1 + $0x288] sm:$0xff]
      %v265 = vld [vmem:[%s1 + $0x290] sm:$0xff]
      %v266 = vld [vmem:[%s1 + $0x298] sm:$0xff]
      %v267 = vld [vmem:[%s1 + $0x2a0] sm:$0xff]
      %v268 = vld [vmem:[%s1 + $0x2a8] sm:$0xff]
      %v269 = vld [vmem:[%s1 + $0x2b0] sm:$0xff]
      %v270 = vld [vmem:[%s1 + $0x2b8] sm:$0xff]
      %v271 = vld [vmem:[%s1 + $0x2c0] sm:$0xff]
      %v272 = vld [vmem:[%s1 + $0x2c8] sm:$0xff]
      %v273 = vld [vmem:[%s1 + $0x2d0] sm:$0xff]
      %v274 = vld [vmem:[%s1 + $0x2d8] sm:$0xff]
      %v275 = vld [vmem:[%s1 + $0x2e0] sm:$0xff]
      %v276 = vld [vmem:[%s1 + $0x2e8] sm:$0xff]
      %v277 = vld [vmem:[%s1 + $0x2f0] sm:$0xff]
      %v278 = vld [vmem:[%s1 + $0x2f8] sm:$0xff]
      %v279 = vld [vmem:[%s1 + $0x300] sm:$0xff]
      %v280 = vld [vmem:[%s1 + $0x308] sm:$0xff]
      %v281 = vld [vmem:[%s1 + $0x310] sm:$0xff]
      %v282 = vld [vmem:[%s1 + $0x318] sm:$0xff]
      %v283 = vld [vmem:[%s1 + $0x320] sm:$0xff]
      %v284 = vld [vmem:[%s1 + $0x328] sm:$0xff]
      %v285 = vld [vmem:[%s1 + $0x330] sm:$0xff]
      %v286 = vld [vmem:[%s1 + $0x338] sm:$0xff]
      %v287 = vld [vmem:[%s1 + $0x340] sm:$0xff]
      %v288 = vld [vmem:[%s1 + $0x348] sm:$0xff]
      %v289 = vld [vmem:[%s1 + $0x350] sm:$0xff]
      %v290 = vld [vmem:[%s1 + $0x358] sm:$0xff]
      %v291 = vld [vmem:[%s1 + $0x360] sm:$0xff]
      %v292 = vld [vmem:[%s1 + $0x368] sm:$0xff]
      %v293 = vld [vmem:[%s1 + $0x370] sm:$0xff]
      %v294 = vld [vmem:[%s1 + $0x378] sm:$0xff]
      %v295 = vld [vmem:[%s1 + $0x380] sm:$0xff]
      %v296 = vld [vmem:[%s1 + $0x388] sm:$0xff]
      %v297 = vld [vmem:[%s1 + $0x390] sm:$0xff]
      %v298 = vld [vmem:[%s1 + $0x398] sm:$0xff]
      %v299 = vld [vmem:[%s1 + $0x3a0] sm:$0xff]
      %v300 = vld [vmem:[%s1 + $0x3a8] sm:$0xff]
      %v301 = vld [vmem:[%s1 + $0x3b0] sm:$0xff]
      %v302 = vld [vmem:[%s1 + $0x3b8] sm:$0xff]
      %v303 = vld [vmem:[%s1 + $0x3c0] sm:$0xff]
      %v304 = vld [vmem:[%s1 + $0x3c8] sm:$0xff]
      %v305 = vld [vmem:[%s1 + $0x3d0] sm:$0xff]
      %v306 = vld [vmem:[%s1 + $0x3d8] sm:$0xff]
      %v307 = vld [vmem:[%s1 + $0x3e0] sm:$0xff]
      %v308 = vld [vmem:[%s1 + $0x3e8] sm:$0xff]
      %v309 = vld [vmem:[%s1 + $0x3f0] sm:$0xff]
      %v310 = vld [vmem:[%s1 + $0x3f8] sm:$0xff]
      %v311 = vld [vmem:[%s1 + $0x400] sm:$0xff]
      %v312 = vld [vmem:[%s1 + $0x408] sm:$0xff]
      %v313 = vld [vmem:[%s1 + $0x410] sm:$0xff]
      %v314 = vld [vmem:[%s1 + $0x418] sm:$0xff]
      %v315 = vld [vmem:[%s1 + $0x420] sm:$0xff]
      %v316 = vld [vmem:[%s1 + $0x428] sm:$0xff]
      %v317 = vld [vmem:[%s1 + $0x430] sm:$0xff]
      %v318 = vld [vmem:[%s1 + $0x438] sm:$0xff]
      %v319 = vld [vmem:[%s1 + $0x440] sm:$0xff]
      %v320 = vld [vmem:[%s1 + $0x448] sm:$0xff]
      %v321 = vld [vmem:[%s1 + $0x450] sm:$0xff]
      %v322 = vld [vmem:[%s1 + $0x458] sm:$0xff]
      %v323 = vld [vmem:[%s1 + $0x460] sm:$0xff]
      %v324 = vld [vmem:[%s1 + $0x468] sm:$0xff]
      %v325 = vld [vmem:[%s1 + $0x470] sm:$0xff]
      %v326 = vld [vmem:[%s1 + $0x478] sm:$0xff]
      %v327 = vld [vmem:[%s1 + $0x480] sm:$0xff]
      %v328 = vld [vmem:[%s1 + $0x488] sm:$0xff]
      %v329 = vld [vmem:[%s1 + $0x490] sm:$0xff]
      %v330 = vld [vmem:[%s1 + $0x498] sm:$0xff]
      %v331 = vld [vmem:[%s1 + $0x4a0] sm:$0xff]
      %v332 = vld [vmem:[%s1 + $0x4a8] sm:$0xff]
      %v333 = vld [vmem:[%s1 + $0x4b0] sm:$0xff]
      %v334 = vld [vmem:[%s1 + $0x4b8] sm:$0xff]
      %v335 = vld [vmem:[%s1 + $0x4c0] sm:$0xff]
      %v336 = vld [vmem:[%s1 + $0x4c8] sm:$0xff]
      %v337 = vld [vmem:[%s1 + $0x4d0] sm:$0xff]
      %v338 = vld [vmem:[%s1 + $0x4d8] sm:$0xff]
      %v339 = vld [vmem:[%s1 + $0x4e0] sm:$0xff]
      %v340 = vld [vmem:[%s1 + $0x4e8] sm:$0xff]
      %v341 = vld [vmem:[%s1 + $0x4f0] sm:$0xff]
      %v342 = vld [vmem:[%s1 + $0x4f8] sm:$0xff]
      %v343 = vld [vmem:[%s1 + $0x500] sm:$0xff]
      %v344 = vld [vmem:[%s1 + $0x508] sm:$0xff]
      %v345 = vld [vmem:[%s1 + $0x510] sm:$0xff]
      %v346 = vld [vmem:[%s1 + $0x518] sm:$0xff]
      %v347 = vld [vmem:[%s1 + $0x520] sm:$0xff]
      %v348 = vld [vmem:[%s1 + $0x528] sm:$0xff]
      %v349 = vld [vmem:[%s1 + $0x530] sm:$0xff]
      %v350 = vld [vmem:[%s1 + $0x538] sm:$0xff]
      %v351 = vld [vmem:[%s1 + $0x540] sm:$0xff]
      %v352 = vld [vmem:[%s1 + $0x548] sm:$0xff]
      %v353 = vld [vmem:[%s1 + $0x550] sm:$0xff]
      %v354 = vld [vmem:[%s1 + $0x558] sm:$0xff]
      %v355 = vld [vmem:[%s1 + $0x560] sm:$0xff]
      %v356 = vld [vmem:[%s1 + $0x568] sm:$0xff]
      %v357 = vld [vmem:[%s1 + $0x570] sm:$0xff]
      %v358 = vld [vmem:[%s1 + $0x578] sm:$0xff]
      %v359 = vld [vmem:[%s1 + $0x580] sm:$0xff]
      %v360 = vld [vmem:[%s1 + $0x588] sm:$0xff]
      %v361 = vld [vmem:[%s1 + $0x590] sm:$0xff]
      %v362 = vld [vmem:[%s1 + $0x598] sm:$0xff]
      %v363 = vld [vmem:[%s1 + $0x5a0] sm:$0xff]
      %v364 = vld [vmem:[%s1 + $0x5a8] sm:$0xff]
      %v365 = vld [vmem:[%s1 + $0x5b0] sm:$0xff]
      %v366 = vld [vmem:[%s1 + $0x5b8] sm:$0xff]
      %v367 = vld [vmem:[%s1 + $0x5c0] sm:$0xff]
      %v368 = vld [vmem:[%s1 + $0x5c8] sm:$0xff]
      %v369 = vld [vmem:[%s1 + $0x5d0] sm:$0xff]
      %v370 = vld [vmem:[%s1 + $0x5d8] sm:$0xff]
      %v371 = vld [vmem:[%s1 + $0x5e0] sm:$0xff]
      %v372 = vld [vmem:[%s1 + $0x5e8] sm:$0xff]
      %v373 = vld [vmem:[%s1 + $0x5f0] sm:$0xff]
      %v374 = vld [vmem:[%s1 + $0x5f8] sm:$0xff]
      %v375 = vld [vmem:[%s1 + $0x600] sm:$0xff]
      %v376 = vld [vmem:[%s1 + $0x608] sm:$0xff]
      %v377 = vld [vmem:[%s1 + $0x610] sm:$0xff]
      %v378 = vld [vmem:[%s1 + $0x618] sm:$0xff]
      %v379 = vld [vmem:[%s1 + $0x620] sm:$0xff]
      %v380 = vld [vmem:[%s1 + $0x628] sm:$0xff]
      %v381 = vld [vmem:[%s1 + $0x630] sm:$0xff]
      %v382 = vld [vmem:[%s1 + $0x638] sm:$0xff]
      %v383 = vld [vmem:[%s1 + $0x640] sm:$0xff]
      %v384 = vld [vmem:[%s1 + $0x648] sm:$0xff]
      %v385 = vld [vmem:[%s1 + $0x650] sm:$0xff]
      %v386 = vld [vmem:[%s1 + $0x658] sm:$0xff]
      %v387 = vld [vmem:[%s1 + $0x660] sm:$0xff]
      %v388 = vld [vmem:[%s1 + $0x668] sm:$0xff]
      %v389 = vld [vmem:[%s1 + $0x670] sm:$0xff]
      %v390 = vld [vmem:[%s1 + $0x678] sm:$0xff]
      %v391 = vld [vmem:[%s1 + $0x680] sm:$0xff]
      %v392 = vld [vmem:[%s1 + $0x688] sm:$0xff]
      %v393 = vld [vmem:[%s1 + $0x690] sm:$0xff]
      %v394 = vld [vmem:[%s1 + $0x698] sm:$0xff]
      %v395 = vld [vmem:[%s1 + $0x6a0] sm:$0xff]
      %v396 = vld [vmem:[%s1 + $0x6a8] sm:$0xff]
      %v397 = vld [vmem:[%s1 + $0x6b0] sm:$0xff]
      %v398 = vld [vmem:[%s1 + $0x6b8] sm:$0xff]
      %v399 = vld [vmem:[%s1 + $0x6c0] sm:$0xff]
      %v400 = vld [vmem:[%s1 + $0x6c8] sm:$0xff]
      %v401 = vld [vmem:[%s1 + $0x6d0] sm:$0xff]
      %v402 = vld [vmem:[%s1 + $0x6d8] sm:$0xff]
      %v403 = vld [vmem:[%s1 + $0x6e0] sm:$0xff]
      %v404 = vld [vmem:[%s1 + $0x6e8] sm:$0xff]
      %v405 = vld [vmem:[%s1 + $0x6f0] sm:$0xff]
      %v406 = vld [vmem:[%s1 + $0x6f8] sm:$0xff]
      %v407 = vld [vmem:[%s1 + $0x700] sm:$0xff]
      %v408 = vld [vmem:[%s1 + $0x708] sm:$0xff]
      %v409 = vld [vmem:[%s1 + $0x710] sm:$0xff]
      %v410 = vld [vmem:[%s1 + $0x718] sm:$0xff]
      %v411 = vld [vmem:[%s1 + $0x720] sm:$0xff]
      %v412 = vld [vmem:[%s1 + $0x728] sm:$0xff]
      %v413 = vld [vmem:[%s1 + $0x730] sm:$0xff]
      %v414 = vld [vmem:[%s1 + $0x738] sm:$0xff]
      %v415 = vld [vmem:[%s1 + $0x740] sm:$0xff]
      %v416 = vld [vmem:[%s1 + $0x748] sm:$0xff]
      %v417 = vld [vmem:[%s1 + $0x750] sm:$0xff]
      %v418 = vld [vmem:[%s1 + $0x758] sm:$0xff]
      %v419 = vld [vmem:[%s1 + $0x760] sm:$0xff]
      %v420 = vld [vmem:[%s1 + $0x768] sm:$0xff]
      %v421 = vld [vmem:[%s1 + $0x770] sm:$0xff]
      %v422 = vld [vmem:[%s1 + $0x778] sm:$0xff]
      %v423 = vld [vmem:[%s1 + $0x780] sm:$0xff]
      %v424 = vld [vmem:[%s1 + $0x788] sm:$0xff]
      %v425 = vld [vmem:[%s1 + $0x790] sm:$0xff]
      %v426 = vld [vmem:[%s1 + $0x798] sm:$0xff]
      %v427 = vld [vmem:[%s1 + $0x7a0] sm:$0xff]
      %v428 = vld [vmem:[%s1 + $0x7a8] sm:$0xff]
      %v429 = vld [vmem:[%s1 + $0x7b0] sm:$0xff]
      %v430 = vld [vmem:[%s1 + $0x7b8] sm:$0xff]
      %v431 = vld [vmem:[%s1 + $0x7c0] sm:$0xff]
      %v432 = vld [vmem:[%s1 + $0x7c8] sm:$0xff]
      %v433 = vld [vmem:[%s1 + $0x7d0] sm:$0xff]
      %v434 = vld [vmem:[%s1 + $0x7d8] sm:$0xff]
      %v435 = vld [vmem:[%s1 + $0x7e0] sm:$0xff]
      %v436 = vld [vmem:[%s1 + $0x7e8] sm:$0xff]
      %v437 = vld [vmem:[%s1 + $0x7f0] sm:$0xff]
      %v438 = vld [vmem:[%s1 + $0x7f8] sm:$0xff]
      %v439 = vld [vmem:[%s173] sm:$0xff]
      %v440 = vld [vmem:[%s173 + $0x8] sm:$0xff]
      %v441 = vld [vmem:[%s173 + $0x10] sm:$0xff]
      %v442 = vld [vmem:[%s173 + $0x18] sm:$0xff]
      %v443 = vld [vmem:[%s173 + $0x20] sm:$0xff]
      %v444 = vld [vmem:[%s173 + $0x28] sm:$0xff]
      %v445 = vld [vmem:[%s173 + $0x30] sm:$0xff]
      %v446 = vld [vmem:[%s173 + $0x38] sm:$0xff]
      %v447 = vld [vmem:[%s173 + $0x40] sm:$0xff]
      %v448 = vld [vmem:[%s173 + $0x48] sm:$0xff]
      %v449 = vld [vmem:[%s173 + $0x50] sm:$0xff]
      %v450 = vld [vmem:[%s173 + $0x58] sm:$0xff]
      %v451 = vld [vmem:[%s173 + $0x60] sm:$0xff]
      %v452 = vld [vmem:[%s173 + $0x68] sm:$0xff]
      %v453 = vld [vmem:[%s173 + $0x70] sm:$0xff]
      %v454 = vld [vmem:[%s173 + $0x78] sm:$0xff]
      %v455 = vld [vmem:[%s173 + $0x80] sm:$0xff]
      %v456 = vld [vmem:[%s173 + $0x88] sm:$0xff]
      %v457 = vld [vmem:[%s173 + $0x90] sm:$0xff]
      %v458 = vld [vmem:[%s173 + $0x98] sm:$0xff]
      %v459 = vld [vmem:[%s173 + $0xa0] sm:$0xff]
      %v460 = vld [vmem:[%s173 + $0xa8] sm:$0xff]
      %v461 = vld [vmem:[%s173 + $0xb0] sm:$0xff]
      %v462 = vld [vmem:[%s173 + $0xb8] sm:$0xff]
      %v463 = vld [vmem:[%s173 + $0xc0] sm:$0xff]
      %v464 = vld [vmem:[%s173 + $0xc8] sm:$0xff]
      %v465 = vld [vmem:[%s173 + $0xd0] sm:$0xff]
      %v466 = vld [vmem:[%s173 + $0xd8] sm:$0xff]
      %v467 = vld [vmem:[%s173 + $0xe0] sm:$0xff]
      %v468 = vld [vmem:[%s173 + $0xe8] sm:$0xff]
      %v469 = vld [vmem:[%s173 + $0xf0] sm:$0xff]
      %v470 = vld [vmem:[%s173 + $0xf8] sm:$0xff]
      %v471 = vld [vmem:[%s173 + $0x100] sm:$0xff]
      %v472 = vld [vmem:[%s173 + $0x108] sm:$0xff]
      %v473 = vld [vmem:[%s173 + $0x110] sm:$0xff]
      %v474 = vld [vmem:[%s173 + $0x118] sm:$0xff]
      %v475 = vld [vmem:[%s173 + $0x120] sm:$0xff]
      %v476 = vld [vmem:[%s173 + $0x128] sm:$0xff]
      %v477 = vld [vmem:[%s173 + $0x130] sm:$0xff]
      %v478 = vld [vmem:[%s173 + $0x138] sm:$0xff]
      %v479 = vld [vmem:[%s173 + $0x140] sm:$0xff]
      %v480 = vld [vmem:[%s173 + $0x148] sm:$0xff]
      %v481 = vld [vmem:[%s173 + $0x150] sm:$0xff]
      %v482 = vld [vmem:[%s173 + $0x158] sm:$0xff]
      %v483 = vld [vmem:[%s173 + $0x160] sm:$0xff]
      %v484 = vld [vmem:[%s173 + $0x168] sm:$0xff]
      %v485 = vld [vmem:[%s173 + $0x170] sm:$0xff]
      %v486 = vld [vmem:[%s173 + $0x178] sm:$0xff]
      %v487 = vld [vmem:[%s173 + $0x180] sm:$0xff]
      %v488 = vld [vmem:[%s173 + $0x188] sm:$0xff]
      %v489 = vld [vmem:[%s173 + $0x190] sm:$0xff]
      %v490 = vld [vmem:[%s173 + $0x198] sm:$0xff]
      %v491 = vld [vmem:[%s173 + $0x1a0] sm:$0xff]
      %v492 = vld [vmem:[%s173 + $0x1a8] sm:$0xff]
      %v493 = vld [vmem:[%s173 + $0x1b0] sm:$0xff]
      %v494 = vld [vmem:[%s173 + $0x1b8] sm:$0xff]
      %v495 = vld [vmem:[%s173 + $0x1c0] sm:$0xff]
      %v496 = vld [vmem:[%s173 + $0x1c8] sm:$0xff]
      %v497 = vld [vmem:[%s173 + $0x1d0] sm:$0xff]
      %v498 = vld [vmem:[%s173 + $0x1d8] sm:$0xff]
      %v499 = vld [vmem:[%s173 + $0x1e0] sm:$0xff]
      %v500 = vld [vmem:[%s173 + $0x1e8] sm:$0xff]
      %v501 = vld [vmem:[%s173 + $0x1f0] sm:$0xff]
      %v502 = vld [vmem:[%s173 + $0x1f8] sm:$0xff]
      %503 = vmatprep.subr.mxu0 %v440
      %504 = vmatpush1.xpose.msra.mxu0 %v439
      %505 = vmatprep.subr.mxu0 %v444
      %506 = vmatpush1.xpose.msra.mxu0 %v443
      %507 = vmatprep.subr.mxu0 %v448
      %508 = vmatpush1.xpose.msra.mxu0 %v447
      %509 = vmatprep.subr.mxu0 %v452
      %510 = vmatpush1.xpose.msra.mxu0 %v451
      %511 = vmatprep.subr.mxu0 %v456
      %512 = vmatpush1.xpose.msra.mxu0 %v455
      %513 = vmatprep.subr.mxu0 %v460
      %514 = vmatpush1.xpose.msra.mxu0 %v459
      %515 = vmatprep.subr.mxu0 %v464
      %516 = vmatpush1.xpose.msra.mxu0 %v463
      %517 = vmatprep.subr.mxu0 %v468
      %518 = vmatpush1.xpose.msra.mxu0 %v467
      %519 = vmatprep.subr.mxu0 %v472
      %520 = vmatpush1.xpose.msra.mxu0 %v471
      %521 = vmatprep.subr.mxu0 %v476
      %522 = vmatpush1.xpose.msra.mxu0 %v475
      %523 = vmatprep.subr.mxu0 %v480
      %524 = vmatpush1.xpose.msra.mxu0 %v479
      %525 = vmatprep.subr.mxu0 %v484
      %526 = vmatpush1.xpose.msra.mxu0 %v483
      %527 = vmatprep.subr.mxu0 %v488
      %528 = vmatpush1.xpose.msra.mxu0 %v487
      %529 = vmatprep.subr.mxu0 %v492
      %530 = vmatpush1.xpose.msra.mxu0 %v491
      %531 = vmatprep.subr.mxu0 %v496
      %532 = vmatpush1.xpose.msra.mxu0 %v495
      %533 = vmatprep.subr.mxu0 %v500
      %534 = vmatpush1.xpose.msra.mxu0 %v499
      %535 = vmatprep.subr.mxu0 0.0
      %536 = vmatpush1.xpose.msra.mxu0 0.0
      %537 = vmatprep.subr.mxu0 0.0
      %538 = vmatpush1.xpose.msra.mxu0 0.0
      %539 = vmatprep.subr.mxu0 0.0
      %540 = vmatpush1.xpose.msra.mxu0 0.0
      %541 = vmatprep.subr.mxu0 0.0
      %542 = vmatpush1.xpose.msra.mxu0 0.0
      %543 = vmatprep.subr.mxu0 0.0
      %544 = vmatpush1.xpose.msra.mxu0 0.0
      %545 = vmatprep.subr.mxu0 0.0
      %546 = vmatpush1.xpose.msra.mxu0 0.0
      %547 = vmatprep.subr.mxu0 0.0
      %548 = vmatpush1.xpose.msra.mxu0 0.0
      %549 = vmatprep.subr.mxu0 0.0
      %550 = vmatpush1.xpose.msra.mxu0 0.0
      %551 = vmatprep.subr.mxu0 0.0
      %552 = vmatpush1.xpose.msra.mxu0 0.0
      %553 = vmatprep.subr.mxu0 0.0
      %554 = vmatpush1.xpose.msra.mxu0 0.0
      %555 = vmatprep.subr.mxu0 0.0
      %556 = vmatpush1.xpose.msra.mxu0 0.0
      %557 = vmatprep.subr.mxu0 0.0
      %558 = vmatpush1.xpose.msra.mxu0 0.0
      %559 = vmatprep.subr.mxu0 0.0
      %560 = vmatpush1.xpose.msra.mxu0 0.0
      %561 = vmatprep.subr.mxu0 0.0
      %562 = vmatpush1.xpose.msra.mxu0 0.0
      %563 = vmatprep.subr.mxu0 0.0
      %564 = vmatpush1.xpose.msra.mxu0 0.0
      %565 = vmatprep.subr.mxu0 0.0
      %566 = vmatpush1.xpose.msra.mxu0 0.0
      %567 = vmatprep.mubr.f32.mxu0 %v184
      %568 = vmatmul.mubr.f32.gmra.mrb[0].mxu0 %v183
      %v569 = vpop.f32.mrb[0].mxu0
      %v570 = vadd.f32 0.0, %v569
      %v571 = vpop.f32.mrb[0].mxu0
      %572 = vmatprep.mubr.f32.mxu0 %v188
      %573 = vmatmul.mubr.f32.gmra.mrb[0].mxu0 %v187
      %v574 = vpop.f32.mrb[0].mxu0
      %v575 = vadd.f32 0.0, %v574
      %v576 = vpop.f32.mrb[0].mxu0
      %577 = vmatprep.mubr.f32.mxu0 %v192
      %578 = vmatmul.mubr.f32.gmra.mrb[0].mxu0 %v191
      %v579 = vpop.f32.mrb[0].mxu0
      %v580 = vadd.f32 0.0, %v579
      %v581 = vpop.f32.mrb[0].mxu0
      %582 = vmatprep.mubr.f32.mxu0 %v196
      %583 = vmatmul.mubr.f32.gmra.mrb[0].mxu0 %v195
      %v584 = vpop.f32.mrb[0].mxu0
      %v585 = vadd.f32 0.0, %v584
      %v586 = vpop.f32.mrb[0].mxu0
      %587 = vmatprep.mubr.f32.mxu0 %v200
      %588 = vmatmul.mubr.f32.gmra.mrb[0].mxu0 %v199
      %v589 = vpop.f32.mrb[0].mxu0
      %v590 = vadd.f32 0.0, %v589
      %v591 = vpop.f32.mrb[0].mxu0
      %592 = vmatprep.mubr.f32.mxu0 %v204
      %593 = vmatmul.mubr.f32.gmra.mrb[0].mxu0 %v203
      %v594 = vpop.f32.mrb[0].mxu0
      %v595 = vadd.f32 0.0, %v594
      %v596 = vpop.f32.mrb[0].mxu0
      %597 = vmatprep.mubr.f32.mxu0 %v208
      %598 = vmatmul.mubr.f32.gmra.mrb[0].mxu0 %v207
      %v599 = vpop.f32.mrb[0].mxu0
      %v600 = vadd.f32 0.0, %v599
      %v601 = vpop.f32.mrb[0].mxu0
      %602 = vmatprep.mubr.f32.mxu0 %v212
      %603 = vmatmul.mubr.f32.gmra.mrb[0].mxu0 %v211
      %v604 = vpop.f32.mrb[0].mxu0
      %v605 = vadd.f32 0.0, %v604
      %v606 = vpop.f32.mrb[0].mxu0
      %607 = vmatprep.mubr.f32.mxu0 %v216
      %608 = vmatmul.mubr.f32.gmra.mrb[0].mxu0 %v215
      %v609 = vpop.f32.mrb[0].mxu0
      %v610 = vadd.f32 0.0, %v609
      %v611 = vpop.f32.mrb[0].mxu0
      %612 = vmatprep.mubr.f32.mxu0 %v220
      %613 = vmatmul.mubr.f32.gmra.mrb[0].mxu0 %v219
      %v614 = vpop.f32.mrb[0].mxu0
      %v615 = vadd.f32 0.0, %v614
      %v616 = vpop.f32.mrb[0].mxu0
      %617 = vmatprep.mubr.f32.mxu0 %v224
      %618 = vmatmul.mubr.f32.gmra.mrb[0].mxu0 %v223
      %v619 = vpop.f32.mrb[0].mxu0
      %v620 = vadd.f32 0.0, %v619
      %v621 = vpop.f32.mrb[0].mxu0
      %622 = vmatprep.mubr.f32.mxu0 %v228
      %623 = vmatmul.mubr.f32.gmra.mrb[0].mxu0 %v227
      %v624 = vpop.f32.mrb[0].mxu0
      %v625 = vadd.f32 0.0, %v624
      %v626 = vpop.f32.mrb[0].mxu0
      %627 = vmatprep.mubr.f32.mxu0 %v232
      %628 = vmatmul.mubr.f32.gmra.mrb[0].mxu0 %v231
      %v629 = vpop.f32.mrb[0].mxu0
      %v630 = vadd.f32 0.0, %v629
      %v631 = vpop.f32.mrb[0].mxu0
      %632 = vmatprep.mubr.f32.mxu0 %v236
      %633 = vmatmul.mubr.f32.gmra.mrb[0].mxu0 %v235
      %v634 = vpop.f32.mrb[0].mxu0
      %v635 = vadd.f32 0.0, %v634
      %v636 = vpop.f32.mrb[0].mxu0
      %637 = vmatprep.mubr.f32.mxu0 %v240
      %638 = vmatmul.mubr.f32.gmra.mrb[0].mxu0 %v239
      %v639 = vpop.f32.mrb[0].mxu0
      %v640 = vadd.f32 0.0, %v639
      %v641 = vpop.f32.mrb[0].mxu0
      %642 = vmatprep.mubr.f32.mxu0 %v244
      %643 = vmatmul.mubr.f32.gmra.mrb[0].mxu0 %v243
      %v644 = vpop.f32.mrb[0].mxu0
      %v645 = vadd.f32 0.0, %v644
      %v646 = vpop.f32.mrb[0].mxu0
      %647 = vmatprep.mubr.f32.mxu0 %v248
      %648 = vmatmul.mubr.f32.gmra.mrb[0].mxu0 %v247
      %v649 = vpop.f32.mrb[0].mxu0
      %v650 = vadd.f32 0.0, %v649
      %v651 = vpop.f32.mrb[0].mxu0
      %652 = vmatprep.mubr.f32.mxu0 %v252
      %653 = vmatmul.mubr.f32.gmra.mrb[0].mxu0 %v251
      %v654 = vpop.f32.mrb[0].mxu0
      %v655 = vadd.f32 0.0, %v654
      %v656 = vpop.f32.mrb[0].mxu0
      %657 = vmatprep.mubr.f32.mxu0 %v256
      %658 = vmatmul.mubr.f32.gmra.mrb[0].mxu0 %v255
      %v659 = vpop.f32.mrb[0].mxu0
      %v660 = vadd.f32 0.0, %v659
      %v661 = vpop.f32.mrb[0].mxu0
      %662 = vmatprep.mubr.f32.mxu0 %v260
      %663 = vmatmul.mubr.f32.gmra.mrb[0].mxu0 %v259
      %v664 = vpop.f32.mrb[0].mxu0
      %v665 = vadd.f32 0.0, %v664
      %v666 = vpop.f32.mrb[0].mxu0
      %667 = vmatprep.mubr.f32.mxu0 %v264
      %668 = vmatmul.mubr.f32.gmra.mrb[0].mxu0 %v263
      %v669 = vpop.f32.mrb[0].mxu0
      %v670 = vadd.f32 0.0, %v669
      %v671 = vpop.f32.mrb[0].mxu0
      %672 = vmatprep.mubr.f32.mxu0 %v268
      %673 = vmatmul.mubr.f32.gmra.mrb[0].mxu0 %v267
      %v674 = vpop.f32.mrb[0].mxu0
      %v675 = vadd.f32 0.0, %v674
      %v676 = vpop.f32.mrb[0].mxu0
      %677 = vmatprep.mubr.f32.mxu0 %v272
      %678 = vmatmul.mubr.f32.gmra.mrb[0].mxu0 %v271
      %v679 = vpop.f32.mrb[0].mxu0
      %v680 = vadd.f32 0.0, %v679
      %v681 = vpop.f32.mrb[0].mxu0
      %682 = vmatprep.mubr.f32.mxu0 %v276
      %683 = vmatmul.mubr.f32.gmra.mrb[0].mxu0 %v275
      %v684 = vpop.f32.mrb[0].mxu0
      %v685 = vadd.f32 0.0, %v684
      %v686 = vpop.f32.mrb[0].mxu0
      %687 = vmatprep.mubr.f32.mxu0 %v280
      %688 = vmatmul.mubr.f32.gmra.mrb[0].mxu0 %v279
      %v689 = vpop.f32.mrb[0].mxu0
      %v690 = vadd.f32 0.0, %v689
      %v691 = vpop.f32.mrb[0].mxu0
      %692 = vmatprep.mubr.f32.mxu0 %v284
      %693 = vmatmul.mubr.f32.gmra.mrb[0].mxu0 %v283
      %v694 = vpop.f32.mrb[0].mxu0
      %v695 = vadd.f32 0.0, %v694
      %v696 = vpop.f32.mrb[0].mxu0
      %697 = vmatprep.mubr.f32.mxu0 %v288
      %698 = vmatmul.mubr.f32.gmra.mrb[0].mxu0 %v287
      %v699 = vpop.f32.mrb[0].mxu0
      %v700 = vadd.f32 0.0, %v699
      %v701 = vpop.f32.mrb[0].mxu0
      %702 = vmatprep.mubr.f32.mxu0 %v292
      %703 = vmatmul.mubr.f32.gmra.mrb[0].mxu0 %v291
      %v704 = vpop.f32.mrb[0].mxu0
      %v705 = vadd.f32 0.0, %v704
      %v706 = vpop.f32.mrb[0].mxu0
      %707 = vmatprep.mubr.f32.mxu0 %v296
      %708 = vmatmul.mubr.f32.gmra.mrb[0].mxu0 %v295
      %v709 = vpop.f32.mrb[0].mxu0
      %v710 = vadd.f32 0.0, %v709
      %v711 = vpop.f32.mrb[0].mxu0
      %712 = vmatprep.mubr.f32.mxu0 %v300
      %713 = vmatmul.mubr.f32.gmra.mrb[0].mxu0 %v299
      %v714 = vpop.f32.mrb[0].mxu0
      %v715 = vadd.f32 0.0, %v714
      %v716 = vpop.f32.mrb[0].mxu0
      %717 = vmatprep.mubr.f32.mxu0 %v304
      %718 = vmatmul.mubr.f32.gmra.mrb[0].mxu0 %v303
      %v719 = vpop.f32.mrb[0].mxu0
      %v720 = vadd.f32 0.0, %v719
      %v721 = vpop.f32.mrb[0].mxu0
      %722 = vmatprep.mubr.f32.mxu0 %v308
      %723 = vmatmul.mubr.f32.gmra.mrb[0].mxu0 %v307
      %v724 = vpop.f32.mrb[0].mxu0
      %v725 = vadd.f32 0.0, %v724
      %v726 = vpop.f32.mrb[0].mxu0
      %727 = vmatprep.mubr.f32.mxu0 %v312
      %728 = vmatmul.mubr.f32.gmra.mrb[0].mxu0 %v311
      %v729 = vpop.f32.mrb[0].mxu0
      %v730 = vadd.f32 0.0, %v729
      %v731 = vpop.f32.mrb[0].mxu0
      %732 = vmatprep.mubr.f32.mxu0 %v316
      %733 = vmatmul.mubr.f32.gmra.mrb[0].mxu0 %v315
      %v734 = vpop.f32.mrb[0].mxu0
      %v735 = vadd.f32 0.0, %v734
      %v736 = vpop.f32.mrb[0].mxu0
      %737 = vmatprep.mubr.f32.mxu0 %v320
      %738 = vmatmul.mubr.f32.gmra.mrb[0].mxu0 %v319
      %v739 = vpop.f32.mrb[0].mxu0
      %v740 = vadd.f32 0.0, %v739
      %v741 = vpop.f32.mrb[0].mxu0
      %742 = vmatprep.mubr.f32.mxu0 %v324
      %743 = vmatmul.mubr.f32.gmra.mrb[0].mxu0 %v323
      %v744 = vpop.f32.mrb[0].mxu0
      %v745 = vadd.f32 0.0, %v744
      %v746 = vpop.f32.mrb[0].mxu0
      %747 = vmatprep.mubr.f32.mxu0 %v328
      %748 = vmatmul.mubr.f32.gmra.mrb[0].mxu0 %v327
      %v749 = vpop.f32.mrb[0].mxu0
      %v750 = vadd.f32 0.0, %v749
      %v751 = vpop.f32.mrb[0].mxu0
      %752 = vmatprep.mubr.f32.mxu0 %v332
      %753 = vmatmul.mubr.f32.gmra.mrb[0].mxu0 %v331
      %v754 = vpop.f32.mrb[0].mxu0
      %v755 = vadd.f32 0.0, %v754
      %v756 = vpop.f32.mrb[0].mxu0
      %757 = vmatprep.mubr.f32.mxu0 %v336
      %758 = vmatmul.mubr.f32.gmra.mrb[0].mxu0 %v335
      %v759 = vpop.f32.mrb[0].mxu0
      %v760 = vadd.f32 0.0, %v759
      %v761 = vpop.f32.mrb[0].mxu0
      %762 = vmatprep.mubr.f32.mxu0 %v340
      %763 = vmatmul.mubr.f32.gmra.mrb[0].mxu0 %v339
      %v764 = vpop.f32.mrb[0].mxu0
      %v765 = vadd.f32 0.0, %v764
      %v766 = vpop.f32.mrb[0].mxu0
      %767 = vmatprep.mubr.f32.mxu0 %v344
      %768 = vmatmul.mubr.f32.gmra.mrb[0].mxu0 %v343
      %v769 = vpop.f32.mrb[0].mxu0
      %v770 = vadd.f32 0.0, %v769
      %v771 = vpop.f32.mrb[0].mxu0
      %772 = vmatprep.mubr.f32.mxu0 %v348
      %773 = vmatmul.mubr.f32.gmra.mrb[0].mxu0 %v347
      %v774 = vpop.f32.mrb[0].mxu0
      %v775 = vadd.f32 0.0, %v774
      %v776 = vpop.f32.mrb[0].mxu0
      %777 = vmatprep.mubr.f32.mxu0 %v352
      %778 = vmatmul.mubr.f32.gmra.mrb[0].mxu0 %v351
      %v779 = vpop.f32.mrb[0].mxu0
      %v780 = vadd.f32 0.0, %v779
      %v781 = vpop.f32.mrb[0].mxu0
      %782 = vmatprep.mubr.f32.mxu0 %v356
      %783 = vmatmul.mubr.f32.gmra.mrb[0].mxu0 %v355
      %v784 = vpop.f32.mrb[0].mxu0
      %v785 = vadd.f32 0.0, %v784
      %v786 = vpop.f32.mrb[0].mxu0
      %787 = vmatprep.mubr.f32.mxu0 %v360
      %788 = vmatmul.mubr.f32.gmra.mrb[0].mxu0 %v359
      %v789 = vpop.f32.mrb[0].mxu0
      %v790 = vadd.f32 0.0, %v789
      %v791 = vpop.f32.mrb[0].mxu0
      %792 = vmatprep.mubr.f32.mxu0 %v364
      %793 = vmatmul.mubr.f32.gmra.mrb[0].mxu0 %v363
      %v794 = vpop.f32.mrb[0].mxu0
      %v795 = vadd.f32 0.0, %v794
      %v796 = vpop.f32.mrb[0].mxu0
      %797 = vmatprep.mubr.f32.mxu0 %v368
      %798 = vmatmul.mubr.f32.gmra.mrb[0].mxu0 %v367
      %v799 = vpop.f32.mrb[0].mxu0
      %v800 = vadd.f32 0.0, %v799
      %v801 = vpop.f32.mrb[0].mxu0
      %802 = vmatprep.mubr.f32.mxu0 %v372
      %803 = vmatmul.mubr.f32.gmra.mrb[0].mxu0 %v371
      %v804 = vpop.f32.mrb[0].mxu0
      %v805 = vadd.f32 0.0, %v804
      %v806 = vpop.f32.mrb[0].mxu0
      %807 = vmatprep.mubr.f32.mxu0 %v376
      %808 = vmatmul.mubr.f32.gmra.mrb[0].mxu0 %v375
      %v809 = vpop.f32.mrb[0].mxu0
      %v810 = vadd.f32 0.0, %v809
      %v811 = vpop.f32.mrb[0].mxu0
      %812 = vmatprep.mubr.f32.mxu0 %v380
      %813 = vmatmul.mubr.f32.gmra.mrb[0].mxu0 %v379
      %v814 = vpop.f32.mrb[0].mxu0
      %v815 = vadd.f32 0.0, %v814
      %v816 = vpop.f32.mrb[0].mxu0
      %817 = vmatprep.mubr.f32.mxu0 %v384
      %818 = vmatmul.mubr.f32.gmra.mrb[0].mxu0 %v383
      %v819 = vpop.f32.mrb[0].mxu0
      %v820 = vadd.f32 0.0, %v819
      %v821 = vpop.f32.mrb[0].mxu0
      %822 = vmatprep.mubr.f32.mxu0 %v388
      %823 = vmatmul.mubr.f32.gmra.mrb[0].mxu0 %v387
      %v824 = vpop.f32.mrb[0].mxu0
      %v825 = vadd.f32 0.0, %v824
      %v826 = vpop.f32.mrb[0].mxu0
      %827 = vmatprep.mubr.f32.mxu0 %v392
      %828 = vmatmul.mubr.f32.gmra.mrb[0].mxu0 %v391
      %v829 = vpop.f32.mrb[0].mxu0
      %v830 = vadd.f32 0.0, %v829
      %v831 = vpop.f32.mrb[0].mxu0
      %832 = vmatprep.mubr.f32.mxu0 %v396
      %833 = vmatmul.mubr.f32.gmra.mrb[0].mxu0 %v395
      %v834 = vpop.f32.mrb[0].mxu0
      %v835 = vadd.f32 0.0, %v834
      %v836 = vpop.f32.mrb[0].mxu0
      %837 = vmatprep.mubr.f32.mxu0 %v400
      %838 = vmatmul.mubr.f32.gmra.mrb[0].mxu0 %v399
      %v839 = vpop.f32.mrb[0].mxu0
      %v840 = vadd.f32 0.0, %v839
      %v841 = vpop.f32.mrb[0].mxu0
      %842 = vmatprep.mubr.f32.mxu0 %v404
      %843 = vmatmul.mubr.f32.gmra.mrb[0].mxu0 %v403
      %v844 = vpop.f32.mrb[0].mxu0
      %v845 = vadd.f32 0.0, %v844
      %v846 = vpop.f32.mrb[0].mxu0
      %847 = vmatprep.mubr.f32.mxu0 %v408
      %848 = vmatmul.mubr.f32.gmra.mrb[0].mxu0 %v407
      %v849 = vpop.f32.mrb[0].mxu0
      %v850 = vadd.f32 0.0, %v849
      %v851 = vpop.f32.mrb[0].mxu0
      %852 = vmatprep.mubr.f32.mxu0 %v412
      %853 = vmatmul.mubr.f32.gmra.mrb[0].mxu0 %v411
      %v854 = vpop.f32.mrb[0].mxu0
      %v855 = vadd.f32 0.0, %v854
      %v856 = vpop.f32.mrb[0].mxu0
      %857 = vmatprep.mubr.f32.mxu0 %v416
      %858 = vmatmul.mubr.f32.gmra.mrb[0].mxu0 %v415
      %v859 = vpop.f32.mrb[0].mxu0
      %v860 = vadd.f32 0.0, %v859
      %v861 = vpop.f32.mrb[0].mxu0
      %862 = vmatprep.mubr.f32.mxu0 %v420
      %863 = vmatmul.mubr.f32.gmra.mrb[0].mxu0 %v419
      %v864 = vpop.f32.mrb[0].mxu0
      %v865 = vadd.f32 0.0, %v864
      %v866 = vpop.f32.mrb[0].mxu0
      %867 = vmatprep.mubr.f32.mxu0 %v424
      %868 = vmatmul.mubr.f32.gmra.mrb[0].mxu0 %v423
      %v869 = vpop.f32.mrb[0].mxu0
      %v870 = vadd.f32 0.0, %v869
      %v871 = vpop.f32.mrb[0].mxu0
      %872 = vmatprep.mubr.f32.mxu0 %v428
      %873 = vmatmul.mubr.f32.gmra.mrb[0].mxu0 %v427
      %v874 = vpop.f32.mrb[0].mxu0
      %v875 = vadd.f32 0.0, %v874
      %v876 = vpop.f32.mrb[0].mxu0
      %877 = vmatprep.mubr.f32.mxu0 %v432
      %878 = vmatmul.mubr.f32.gmra.mrb[0].mxu0 %v431
      %v879 = vpop.f32.mrb[0].mxu0
      %v880 = vadd.f32 0.0, %v879
      %v881 = vpop.f32.mrb[0].mxu0
      %882 = vmatprep.mubr.f32.mxu0 %v436
      %883 = vmatmul.mubr.f32.gmra.mrb[0].mxu0 %v435
      %v884 = vpop.f32.mrb[0].mxu0
      %v885 = vadd.f32 0.0, %v884
      %v886 = vpop.f32.mrb[0].mxu0
      %887 = vdwg.mxu0
      %888 = vmatprep.subr.mxu0 %v442
      %889 = vmatpush1.xpose.msra.mxu0 %v441
      %890 = vmatprep.subr.mxu0 %v446
      %891 = vmatpush1.xpose.msra.mxu0 %v445
      %892 = vmatprep.subr.mxu0 %v450
      %893 = vmatpush1.xpose.msra.mxu0 %v449
      %894 = vmatprep.subr.mxu0 %v454
      %895 = vmatpush1.xpose.msra.mxu0 %v453
      %896 = vmatprep.subr.mxu0 %v458
      %897 = vmatpush1.xpose.msra.mxu0 %v457
      %898 = vmatprep.subr.mxu0 %v462
      %899 = vmatpush1.xpose.msra.mxu0 %v461
      %900 = vmatprep.subr.mxu0 %v466
      %901 = vmatpush1.xpose.msra.mxu0 %v465
      %902 = vmatprep.subr.mxu0 %v470
      %903 = vmatpush1.xpose.msra.mxu0 %v469
      %904 = vmatprep.subr.mxu0 %v474
      %905 = vmatpush1.xpose.msra.mxu0 %v473
      %906 = vmatprep.subr.mxu0 %v478
      %907 = vmatpush1.xpose.msra.mxu0 %v477
      %908 = vmatprep.subr.mxu0 %v482
      %909 = vmatpush1.xpose.msra.mxu0 %v481
      %910 = vmatprep.subr.mxu0 %v486
      %911 = vmatpush1.xpose.msra.mxu0 %v485
      %912 = vmatprep.subr.mxu0 %v490
      %913 = vmatpush1.xpose.msra.mxu0 %v489
      %914 = vmatprep.subr.mxu0 %v494
      %915 = vmatpush1.xpose.msra.mxu0 %v493
      %916 = vmatprep.subr.mxu0 %v498
      %917 = vmatpush1.xpose.msra.mxu0 %v497
      %918 = vmatprep.subr.mxu0 %v502
      %919 = vmatpush1.xpose.msra.mxu0 %v501
      %920 = vmatprep.subr.mxu0 0.0
      %921 = vmatpush1.xpose.msra.mxu0 0.0
      %922 = vmatprep.subr.mxu0 0.0
      %923 = vmatpush1.xpose.msra.mxu0 0.0
      %924 = vmatprep.subr.mxu0 0.0
      %925 = vmatpush1.xpose.msra.mxu0 0.0
      %926 = vmatprep.subr.mxu0 0.0
      %927 = vmatpush1.xpose.msra.mxu0 0.0
      %928 = vmatprep.subr.mxu0 0.0
      %929 = vmatpush1.xpose.msra.mxu0 0.0
      %930 = vmatprep.subr.mxu0 0.0
      %931 = vmatpush1.xpose.msra.mxu0 0.0
      %932 = vmatprep.subr.mxu0 0.0
      %933 = vmatpush1.xpose.msra.mxu0 0.0
      %934 = vmatprep.subr.mxu0 0.0
      %935 = vmatpush1.xpose.msra.mxu0 0.0
      %936 = vmatprep.subr.mxu0 0.0
      %937 = vmatpush1.xpose.msra.mxu0 0.0
      %938 = vmatprep.subr.mxu0 0.0
      %939 = vmatpush1.xpose.msra.mxu0 0.0
      %940 = vmatprep.subr.mxu0 0.0
      %941 = vmatpush1.xpose.msra.mxu0 0.0
      %942 = vmatprep.subr.mxu0 0.0
      %943 = vmatpush1.xpose.msra.mxu0 0.0
      %944 = vmatprep.subr.mxu0 0.0
      %945 = vmatpush1.xpose.msra.mxu0 0.0
      %946 = vmatprep.subr.mxu0 0.0
      %947 = vmatpush1.xpose.msra.mxu0 0.0
      %948 = vmatprep.subr.mxu0 0.0
      %949 = vmatpush1.xpose.msra.mxu0 0.0
      %950 = vmatprep.subr.mxu0 0.0
      %951 = vmatpush1.xpose.msra.mxu0 0.0
      %952 = vmatprep.mubr.f32.mxu0 %v186
      %953 = vmatmul.mubr.f32.gmra.mrb[0].mxu0 %v185
      %v954 = vpop.f32.mrb[0].mxu0
      %v955 = vadd.f32 %v570, %v954
      %v956 = vpop.f32.mrb[0].mxu0
      %957 = vmatprep.mubr.f32.mxu0 %v190
      %958 = vmatmul.mubr.f32.gmra.mrb[0].mxu0 %v189
      %v959 = vpop.f32.mrb[0].mxu0
      %v960 = vadd.f32 %v575, %v959
      %v961 = vpop.f32.mrb[0].mxu0
      %962 = vmatprep.mubr.f32.mxu0 %v194
      %963 = vmatmul.mubr.f32.gmra.mrb[0].mxu0 %v193
      %v964 = vpop.f32.mrb[0].mxu0
      %v965 = vadd.f32 %v580, %v964
      %v966 = vpop.f32.mrb[0].mxu0
      %967 = vmatprep.mubr.f32.mxu0 %v198
      %968 = vmatmul.mubr.f32.gmra.mrb[0].mxu0 %v197
      %v969 = vpop.f32.mrb[0].mxu0
      %v970 = vadd.f32 %v585, %v969
      %v971 = vpop.f32.mrb[0].mxu0
      %972 = vmatprep.mubr.f32.mxu0 %v202
      %973 = vmatmul.mubr.f32.gmra.mrb[0].mxu0 %v201
      %v974 = vpop.f32.mrb[0].mxu0
      %v975 = vadd.f32 %v590, %v974
      %v976 = vpop.f32.mrb[0].mxu0
      %977 = vmatprep.mubr.f32.mxu0 %v206
      %978 = vmatmul.mubr.f32.gmra.mrb[0].mxu0 %v205
      %v979 = vpop.f32.mrb[0].mxu0
      %v980 = vadd.f32 %v595, %v979
      %v981 = vpop.f32.mrb[0].mxu0
      %982 = vmatprep.mubr.f32.mxu0 %v210
      %983 = vmatmul.mubr.f32.gmra.mrb[0].mxu0 %v209
      %v984 = vpop.f32.mrb[0].mxu0
      %v985 = vadd.f32 %v600, %v984
      %v986 = vpop.f32.mrb[0].mxu0
      %987 = vmatprep.mubr.f32.mxu0 %v214
      %988 = vmatmul.mubr.f32.gmra.mrb[0].mxu0 %v213
      %v989 = vpop.f32.mrb[0].mxu0
      %v990 = vadd.f32 %v605, %v989
      %v991 = vpop.f32.mrb[0].mxu0
      %992 = vmatprep.mubr.f32.mxu0 %v218
      %993 = vmatmul.mubr.f32.gmra.mrb[0].mxu0 %v217
      %v994 = vpop.f32.mrb[0].mxu0
      %v995 = vadd.f32 %v610, %v994
      %v996 = vpop.f32.mrb[0].mxu0
      %997 = vmatprep.mubr.f32.mxu0 %v222
      %998 = vmatmul.mubr.f32.gmra.mrb[0].mxu0 %v221
      %v999 = vpop.f32.mrb[0].mxu0
      %v1000 = vadd.f32 %v615, %v999
      %v1001 = vpop.f32.mrb[0].mxu0
      %1002 = vmatprep.mubr.f32.mxu0 %v226
      %1003 = vmatmul.mubr.f32.gmra.mrb[0].mxu0 %v225
      %v1004 = vpop.f32.mrb[0].mxu0
      %v1005 = vadd.f32 %v620, %v1004
      %v1006 = vpop.f32.mrb[0].mxu0
      %1007 = vmatprep.mubr.f32.mxu0 %v230
      %1008 = vmatmul.mubr.f32.gmra.mrb[0].mxu0 %v229
      %v1009 = vpop.f32.mrb[0].mxu0
      %v1010 = vadd.f32 %v625, %v1009
      %v1011 = vpop.f32.mrb[0].mxu0
      %1012 = vmatprep.mubr.f32.mxu0 %v234
      %1013 = vmatmul.mubr.f32.gmra.mrb[0].mxu0 %v233
      %v1014 = vpop.f32.mrb[0].mxu0
      %v1015 = vadd.f32 %v630, %v1014
      %v1016 = vpop.f32.mrb[0].mxu0
      %1017 = vmatprep.mubr.f32.mxu0 %v238
      %1018 = vmatmul.mubr.f32.gmra.mrb[0].mxu0 %v237
      %v1019 = vpop.f32.mrb[0].mxu0
      %v1020 = vadd.f32 %v635, %v1019
      %v1021 = vpop.f32.mrb[0].mxu0
      %1022 = vmatprep.mubr.f32.mxu0 %v242
      %1023 = vmatmul.mubr.f32.gmra.mrb[0].mxu0 %v241
      %v1024 = vpop.f32.mrb[0].mxu0
      %v1025 = vadd.f32 %v640, %v1024
      %v1026 = vpop.f32.mrb[0].mxu0
      %1027 = vmatprep.mubr.f32.mxu0 %v246
      %1028 = vmatmul.mubr.f32.gmra.mrb[0].mxu0 %v245
      %v1029 = vpop.f32.mrb[0].mxu0
      %v1030 = vadd.f32 %v645, %v1029
      %v1031 = vpop.f32.mrb[0].mxu0
      %1032 = vmatprep.mubr.f32.mxu0 %v250
      %1033 = vmatmul.mubr.f32.gmra.mrb[0].mxu0 %v249
      %v1034 = vpop.f32.mrb[0].mxu0
      %v1035 = vadd.f32 %v650, %v1034
      %v1036 = vpop.f32.mrb[0].mxu0
      %1037 = vmatprep.mubr.f32.mxu0 %v254
      %1038 = vmatmul.mubr.f32.gmra.mrb[0].mxu0 %v253
      %v1039 = vpop.f32.mrb[0].mxu0
      %v1040 = vadd.f32 %v655, %v1039
      %v1041 = vpop.f32.mrb[0].mxu0
      %1042 = vmatprep.mubr.f32.mxu0 %v258
      %1043 = vmatmul.mubr.f32.gmra.mrb[0].mxu0 %v257
      %v1044 = vpop.f32.mrb[0].mxu0
      %v1045 = vadd.f32 %v660, %v1044
      %v1046 = vpop.f32.mrb[0].mxu0
      %1047 = vmatprep.mubr.f32.mxu0 %v262
      %1048 = vmatmul.mubr.f32.gmra.mrb[0].mxu0 %v261
      %v1049 = vpop.f32.mrb[0].mxu0
      %v1050 = vadd.f32 %v665, %v1049
      %v1051 = vpop.f32.mrb[0].mxu0
      %1052 = vmatprep.mubr.f32.mxu0 %v266
      %1053 = vmatmul.mubr.f32.gmra.mrb[0].mxu0 %v265
      %v1054 = vpop.f32.mrb[0].mxu0
      %v1055 = vadd.f32 %v670, %v1054
      %v1056 = vpop.f32.mrb[0].mxu0
      %1057 = vmatprep.mubr.f32.mxu0 %v270
      %1058 = vmatmul.mubr.f32.gmra.mrb[0].mxu0 %v269
      %v1059 = vpop.f32.mrb[0].mxu0
      %v1060 = vadd.f32 %v675, %v1059
      %v1061 = vpop.f32.mrb[0].mxu0
      %1062 = vmatprep.mubr.f32.mxu0 %v274
      %1063 = vmatmul.mubr.f32.gmra.mrb[0].mxu0 %v273
      %v1064 = vpop.f32.mrb[0].mxu0
      %v1065 = vadd.f32 %v680, %v1064
      %v1066 = vpop.f32.mrb[0].mxu0
      %1067 = vmatprep.mubr.f32.mxu0 %v278
      %1068 = vmatmul.mubr.f32.gmra.mrb[0].mxu0 %v277
      %v1069 = vpop.f32.mrb[0].mxu0
      %v1070 = vadd.f32 %v685, %v1069
      %v1071 = vpop.f32.mrb[0].mxu0
      %1072 = vmatprep.mubr.f32.mxu0 %v282
      %1073 = vmatmul.mubr.f32.gmra.mrb[0].mxu0 %v281
      %v1074 = vpop.f32.mrb[0].mxu0
      %v1075 = vadd.f32 %v690, %v1074
      %v1076 = vpop.f32.mrb[0].mxu0
      %1077 = vmatprep.mubr.f32.mxu0 %v286
      %1078 = vmatmul.mubr.f32.gmra.mrb[0].mxu0 %v285
      %v1079 = vpop.f32.mrb[0].mxu0
      %v1080 = vadd.f32 %v695, %v1079
      %v1081 = vpop.f32.mrb[0].mxu0
      %1082 = vmatprep.mubr.f32.mxu0 %v290
      %1083 = vmatmul.mubr.f32.gmra.mrb[0].mxu0 %v289
      %v1084 = vpop.f32.mrb[0].mxu0
      %v1085 = vadd.f32 %v700, %v1084
      %v1086 = vpop.f32.mrb[0].mxu0
      %1087 = vmatprep.mubr.f32.mxu0 %v294
      %1088 = vmatmul.mubr.f32.gmra.mrb[0].mxu0 %v293
      %v1089 = vpop.f32.mrb[0].mxu0
      %v1090 = vadd.f32 %v705, %v1089
      %v1091 = vpop.f32.mrb[0].mxu0
      %1092 = vmatprep.mubr.f32.mxu0 %v298
      %1093 = vmatmul.mubr.f32.gmra.mrb[0].mxu0 %v297
      %v1094 = vpop.f32.mrb[0].mxu0
      %v1095 = vadd.f32 %v710, %v1094
      %v1096 = vpop.f32.mrb[0].mxu0
      %1097 = vmatprep.mubr.f32.mxu0 %v302
      %1098 = vmatmul.mubr.f32.gmra.mrb[0].mxu0 %v301
      %v1099 = vpop.f32.mrb[0].mxu0
      %v1100 = vadd.f32 %v715, %v1099
      %v1101 = vpop.f32.mrb[0].mxu0
      %1102 = vmatprep.mubr.f32.mxu0 %v306
      %1103 = vmatmul.mubr.f32.gmra.mrb[0].mxu0 %v305
      %v1104 = vpop.f32.mrb[0].mxu0
      %v1105 = vadd.f32 %v720, %v1104
      %v1106 = vpop.f32.mrb[0].mxu0
      %1107 = vmatprep.mubr.f32.mxu0 %v310
      %1108 = vmatmul.mubr.f32.gmra.mrb[0].mxu0 %v309
      %v1109 = vpop.f32.mrb[0].mxu0
      %v1110 = vadd.f32 %v725, %v1109
      %v1111 = vpop.f32.mrb[0].mxu0
      %1112 = vmatprep.mubr.f32.mxu0 %v314
      %1113 = vmatmul.mubr.f32.gmra.mrb[0].mxu0 %v313
      %v1114 = vpop.f32.mrb[0].mxu0
      %v1115 = vadd.f32 %v730, %v1114
      %v1116 = vpop.f32.mrb[0].mxu0
      %1117 = vmatprep.mubr.f32.mxu0 %v318
      %1118 = vmatmul.mubr.f32.gmra.mrb[0].mxu0 %v317
      %v1119 = vpop.f32.mrb[0].mxu0
      %v1120 = vadd.f32 %v735, %v1119
      %v1121 = vpop.f32.mrb[0].mxu0
      %1122 = vmatprep.mubr.f32.mxu0 %v322
      %1123 = vmatmul.mubr.f32.gmra.mrb[0].mxu0 %v321
      %v1124 = vpop.f32.mrb[0].mxu0
      %v1125 = vadd.f32 %v740, %v1124
      %v1126 = vpop.f32.mrb[0].mxu0
      %1127 = vmatprep.mubr.f32.mxu0 %v326
      %1128 = vmatmul.mubr.f32.gmra.mrb[0].mxu0 %v325
      %v1129 = vpop.f32.mrb[0].mxu0
      %v1130 = vadd.f32 %v745, %v1129
      %v1131 = vpop.f32.mrb[0].mxu0
      %1132 = vmatprep.mubr.f32.mxu0 %v330
      %1133 = vmatmul.mubr.f32.gmra.mrb[0].mxu0 %v329
      %v1134 = vpop.f32.mrb[0].mxu0
      %v1135 = vadd.f32 %v750, %v1134
      %v1136 = vpop.f32.mrb[0].mxu0
      %1137 = vmatprep.mubr.f32.mxu0 %v334
      %1138 = vmatmul.mubr.f32.gmra.mrb[0].mxu0 %v333
      %v1139 = vpop.f32.mrb[0].mxu0
      %v1140 = vadd.f32 %v755, %v1139
      %v1141 = vpop.f32.mrb[0].mxu0
      %1142 = vmatprep.mubr.f32.mxu0 %v338
      %1143 = vmatmul.mubr.f32.gmra.mrb[0].mxu0 %v337
      %v1144 = vpop.f32.mrb[0].mxu0
      %v1145 = vadd.f32 %v760, %v1144
      %v1146 = vpop.f32.mrb[0].mxu0
      %1147 = vmatprep.mubr.f32.mxu0 %v342
      %1148 = vmatmul.mubr.f32.gmra.mrb[0].mxu0 %v341
      %v1149 = vpop.f32.mrb[0].mxu0
      %v1150 = vadd.f32 %v765, %v1149
      %v1151 = vpop.f32.mrb[0].mxu0
      %1152 = vmatprep.mubr.f32.mxu0 %v346
      %1153 = vmatmul.mubr.f32.gmra.mrb[0].mxu0 %v345
      %v1154 = vpop.f32.mrb[0].mxu0
      %v1155 = vadd.f32 %v770, %v1154
      %v1156 = vpop.f32.mrb[0].mxu0
      %1157 = vmatprep.mubr.f32.mxu0 %v350
      %1158 = vmatmul.mubr.f32.gmra.mrb[0].mxu0 %v349
      %v1159 = vpop.f32.mrb[0].mxu0
      %v1160 = vadd.f32 %v775, %v1159
      %v1161 = vpop.f32.mrb[0].mxu0
      %1162 = vmatprep.mubr.f32.mxu0 %v354
      %1163 = vmatmul.mubr.f32.gmra.mrb[0].mxu0 %v353
      %v1164 = vpop.f32.mrb[0].mxu0
      %v1165 = vadd.f32 %v780, %v1164
      %v1166 = vpop.f32.mrb[0].mxu0
      %1167 = vmatprep.mubr.f32.mxu0 %v358
      %1168 = vmatmul.mubr.f32.gmra.mrb[0].mxu0 %v357
      %v1169 = vpop.f32.mrb[0].mxu0
      %v1170 = vadd.f32 %v785, %v1169
      %v1171 = vpop.f32.mrb[0].mxu0
      %1172 = vmatprep.mubr.f32.mxu0 %v362
      %1173 = vmatmul.mubr.f32.gmra.mrb[0].mxu0 %v361
      %v1174 = vpop.f32.mrb[0].mxu0
      %v1175 = vadd.f32 %v790, %v1174
      %v1176 = vpop.f32.mrb[0].mxu0
      %1177 = vmatprep.mubr.f32.mxu0 %v366
      %1178 = vmatmul.mubr.f32.gmra.mrb[0].mxu0 %v365
      %v1179 = vpop.f32.mrb[0].mxu0
      %v1180 = vadd.f32 %v795, %v1179
      %v1181 = vpop.f32.mrb[0].mxu0
      %1182 = vmatprep.mubr.f32.mxu0 %v370
      %1183 = vmatmul.mubr.f32.gmra.mrb[0].mxu0 %v369
      %v1184 = vpop.f32.mrb[0].mxu0
      %v1185 = vadd.f32 %v800, %v1184
      %v1186 = vpop.f32.mrb[0].mxu0
      %1187 = vmatprep.mubr.f32.mxu0 %v374
      %1188 = vmatmul.mubr.f32.gmra.mrb[0].mxu0 %v373
      %v1189 = vpop.f32.mrb[0].mxu0
      %v1190 = vadd.f32 %v805, %v1189
      %v1191 = vpop.f32.mrb[0].mxu0
      %1192 = vmatprep.mubr.f32.mxu0 %v378
      %1193 = vmatmul.mubr.f32.gmra.mrb[0].mxu0 %v377
      %v1194 = vpop.f32.mrb[0].mxu0
      %v1195 = vadd.f32 %v810, %v1194
      %v1196 = vpop.f32.mrb[0].mxu0
      %1197 = vmatprep.mubr.f32.mxu0 %v382
      %1198 = vmatmul.mubr.f32.gmra.mrb[0].mxu0 %v381
      %v1199 = vpop.f32.mrb[0].mxu0
      %v1200 = vadd.f32 %v815, %v1199
      %v1201 = vpop.f32.mrb[0].mxu0
      %1202 = vmatprep.mubr.f32.mxu0 %v386
      %1203 = vmatmul.mubr.f32.gmra.mrb[0].mxu0 %v385
      %v1204 = vpop.f32.mrb[0].mxu0
      %v1205 = vadd.f32 %v820, %v1204
      %v1206 = vpop.f32.mrb[0].mxu0
      %1207 = vmatprep.mubr.f32.mxu0 %v390
      %1208 = vmatmul.mubr.f32.gmra.mrb[0].mxu0 %v389
      %v1209 = vpop.f32.mrb[0].mxu0
      %v1210 = vadd.f32 %v825, %v1209
      %v1211 = vpop.f32.mrb[0].mxu0
      %1212 = vmatprep.mubr.f32.mxu0 %v394
      %1213 = vmatmul.mubr.f32.gmra.mrb[0].mxu0 %v393
      %v1214 = vpop.f32.mrb[0].mxu0
      %v1215 = vadd.f32 %v830, %v1214
      %v1216 = vpop.f32.mrb[0].mxu0
      %1217 = vmatprep.mubr.f32.mxu0 %v398
      %1218 = vmatmul.mubr.f32.gmra.mrb[0].mxu0 %v397
      %v1219 = vpop.f32.mrb[0].mxu0
      %v1220 = vadd.f32 %v835, %v1219
      %v1221 = vpop.f32.mrb[0].mxu0
      %1222 = vmatprep.mubr.f32.mxu0 %v402
      %1223 = vmatmul.mubr.f32.gmra.mrb[0].mxu0 %v401
      %v1224 = vpop.f32.mrb[0].mxu0
      %v1225 = vadd.f32 %v840, %v1224
      %v1226 = vpop.f32.mrb[0].mxu0
      %1227 = vmatprep.mubr.f32.mxu0 %v406
      %1228 = vmatmul.mubr.f32.gmra.mrb[0].mxu0 %v405
      %v1229 = vpop.f32.mrb[0].mxu0
      %v1230 = vadd.f32 %v845, %v1229
      %v1231 = vpop.f32.mrb[0].mxu0
      %1232 = vmatprep.mubr.f32.mxu0 %v410
      %1233 = vmatmul.mubr.f32.gmra.mrb[0].mxu0 %v409
      %v1234 = vpop.f32.mrb[0].mxu0
      %v1235 = vadd.f32 %v850, %v1234
      %v1236 = vpop.f32.mrb[0].mxu0
      %1237 = vmatprep.mubr.f32.mxu0 %v414
      %1238 = vmatmul.mubr.f32.gmra.mrb[0].mxu0 %v413
      %v1239 = vpop.f32.mrb[0].mxu0
      %v1240 = vadd.f32 %v855, %v1239
      %v1241 = vpop.f32.mrb[0].mxu0
      %1242 = vmatprep.mubr.f32.mxu0 %v418
      %1243 = vmatmul.mubr.f32.gmra.mrb[0].mxu0 %v417
      %v1244 = vpop.f32.mrb[0].mxu0
      %v1245 = vadd.f32 %v860, %v1244
      %v1246 = vpop.f32.mrb[0].mxu0
      %1247 = vmatprep.mubr.f32.mxu0 %v422
      %1248 = vmatmul.mubr.f32.gmra.mrb[0].mxu0 %v421
      %v1249 = vpop.f32.mrb[0].mxu0
      %v1250 = vadd.f32 %v865, %v1249
      %v1251 = vpop.f32.mrb[0].mxu0
      %1252 = vmatprep.mubr.f32.mxu0 %v426
      %1253 = vmatmul.mubr.f32.gmra.mrb[0].mxu0 %v425
      %v1254 = vpop.f32.mrb[0].mxu0
      %v1255 = vadd.f32 %v870, %v1254
      %v1256 = vpop.f32.mrb[0].mxu0
      %1257 = vmatprep.mubr.f32.mxu0 %v430
      %1258 = vmatmul.mubr.f32.gmra.mrb[0].mxu0 %v429
      %v1259 = vpop.f32.mrb[0].mxu0
      %v1260 = vadd.f32 %v875, %v1259
      %v1261 = vpop.f32.mrb[0].mxu0
      %1262 = vmatprep.mubr.f32.mxu0 %v434
      %1263 = vmatmul.mubr.f32.gmra.mrb[0].mxu0 %v433
      %v1264 = vpop.f32.mrb[0].mxu0
      %v1265 = vadd.f32 %v880, %v1264
      %v1266 = vpop.f32.mrb[0].mxu0
      %1267 = vmatprep.mubr.f32.mxu0 %v438
      %1268 = vmatmul.mubr.f32.gmra.mrb[0].mxu0 %v437
      %v1269 = vpop.f32.mrb[0].mxu0
      %v1270 = vadd.f32 %v885, %v1269
      %v1271 = vpop.f32.mrb[0].mxu0
      %1272 = vdwg.mxu0
      %1273 = vst [vmem:[%s182] sm:$0xff] %v955
      %1274 = vst [vmem:[%s182 + $0x8] sm:$0xff] %v960
      %1275 = vst [vmem:[%s182 + $0x10] sm:$0xff] %v965
      %1276 = vst [vmem:[%s182 + $0x18] sm:$0xff] %v970
      %1277 = vst [vmem:[%s182 + $0x20] sm:$0xff] %v975
      %1278 = vst [vmem:[%s182 + $0x28] sm:$0xff] %v980
      %1279 = vst [vmem:[%s182 + $0x30] sm:$0xff] %v985
      %1280 = vst [vmem:[%s182 + $0x38] sm:$0xff] %v990
      %1281 = vst [vmem:[%s182 + $0x40] sm:$0xff] %v995
      %1282 = vst [vmem:[%s182 + $0x48] sm:$0xff] %v1000
      %1283 = vst [vmem:[%s182 + $0x50] sm:$0xff] %v1005
      %1284 = vst [vmem:[%s182 + $0x58] sm:$0xff] %v1010
      %1285 = vst [vmem:[%s182 + $0x60] sm:$0xff] %v1015
      %1286 = vst [vmem:[%s182 + $0x68] sm:$0xff] %v1020
      %1287 = vst [vmem:[%s182 + $0x70] sm:$0xff] %v1025
      %1288 = vst [vmem:[%s182 + $0x78] sm:$0xff] %v1030
      %1289 = vst [vmem:[%s182 + $0x80] sm:$0xff] %v1035
      %1290 = vst [vmem:[%s182 + $0x88] sm:$0xff] %v1040
      %1291 = vst [vmem:[%s182 + $0x90] sm:$0xff] %v1045
      %1292 = vst [vmem:[%s182 + $0x98] sm:$0xff] %v1050
      %1293 = vst [vmem:[%s182 + $0xa0] sm:$0xff] %v1055
      %1294 = vst [vmem:[%s182 + $0xa8] sm:$0xff] %v1060
      %1295 = vst [vmem:[%s182 + $0xb0] sm:$0xff] %v1065
      %1296 = vst [vmem:[%s182 + $0xb8] sm:$0xff] %v1070
      %1297 = vst [vmem:[%s182 + $0xc0] sm:$0xff] %v1075
      %1298 = vst [vmem:[%s182 + $0xc8] sm:$0xff] %v1080
      %1299 = vst [vmem:[%s182 + $0xd0] sm:$0xff] %v1085
      %1300 = vst [vmem:[%s182 + $0xd8] sm:$0xff] %v1090
      %1301 = vst [vmem:[%s182 + $0xe0] sm:$0xff] %v1095
      %1302 = vst [vmem:[%s182 + $0xe8] sm:$0xff] %v1100
      %1303 = vst [vmem:[%s182 + $0xf0] sm:$0xff] %v1105
      %1304 = vst [vmem:[%s182 + $0xf8] sm:$0xff] %v1110
      %1305 = vst [vmem:[%s182 + $0x100] sm:$0xff] %v1115
      %1306 = vst [vmem:[%s182 + $0x108] sm:$0xff] %v1120
      %1307 = vst [vmem:[%s182 + $0x110] sm:$0xff] %v1125
      %1308 = vst [vmem:[%s182 + $0x118] sm:$0xff] %v1130
      %1309 = vst [vmem:[%s182 + $0x120] sm:$0xff] %v1135
      %1310 = vst [vmem:[%s182 + $0x128] sm:$0xff] %v1140
      %1311 = vst [vmem:[%s182 + $0x130] sm:$0xff] %v1145
      %1312 = vst [vmem:[%s182 + $0x138] sm:$0xff] %v1150
      %1313 = vst [vmem:[%s182 + $0x140] sm:$0xff] %v1155
      %1314 = vst [vmem:[%s182 + $0x148] sm:$0xff] %v1160
      %1315 = vst [vmem:[%s182 + $0x150] sm:$0xff] %v1165
      %1316 = vst [vmem:[%s182 + $0x158] sm:$0xff] %v1170
      %1317 = vst [vmem:[%s182 + $0x160] sm:$0xff] %v1175
      %1318 = vst [vmem:[%s182 + $0x168] sm:$0xff] %v1180
      %1319 = vst [vmem:[%s182 + $0x170] sm:$0xff] %v1185
      %1320 = vst [vmem:[%s182 + $0x178] sm:$0xff] %v1190
      %1321 = vst [vmem:[%s182 + $0x180] sm:$0xff] %v1195
      %1322 = vst [vmem:[%s182 + $0x188] sm:$0xff] %v1200
      %1323 = vst [vmem:[%s182 + $0x190] sm:$0xff] %v1205
      %1324 = vst [vmem:[%s182 + $0x198] sm:$0xff] %v1210
      %1325 = vst [vmem:[%s182 + $0x1a0] sm:$0xff] %v1215
      %1326 = vst [vmem:[%s182 + $0x1a8] sm:$0xff] %v1220
      %1327 = vst [vmem:[%s182 + $0x1b0] sm:$0xff] %v1225
      %1328 = vst [vmem:[%s182 + $0x1b8] sm:$0xff] %v1230
      %1329 = vst [vmem:[%s182 + $0x1c0] sm:$0xff] %v1235
      %1330 = vst [vmem:[%s182 + $0x1c8] sm:$0xff] %v1240
      %1331 = vst [vmem:[%s182 + $0x1d0] sm:$0xff] %v1245
      %1332 = vst [vmem:[%s182 + $0x1d8] sm:$0xff] %v1250
      %1333 = vst [vmem:[%s182 + $0x1e0] sm:$0xff] %v1255
      %1334 = vst [vmem:[%s182 + $0x1e8] sm:$0xff] %v1260
      %1335 = vst [vmem:[%s182 + $0x1f0] sm:$0xff] %v1265
      %1336 = vst [vmem:[%s182 + $0x1f8] sm:$0xff] %v1270
      %p1337 = scmp.lt.s32.totalorder %s17, 1
      %s1338 = scalar_select %p1337, %s17, 1
      %p1339 = scmp.lt.s32.totalorder %s18, 0
      %s1340 = scalar_select %p1339, %s18, 0
      %s1341 = smul.addr %s1338, 64
      %s1342 = sadd.s32 %s1340, %s1341
      %s1343 = smul.addr %s1342, 8
      %s1344 = scalar_lea.vmem %s2, %s1343
      // Predicated region
      $region29: #{stft_encoder.1} parent=27 // pred_check
        %p1345 = pneg %p94
      $region30: #{stft_encoder.1} parent=27 // pred_check_branch
        %1347 = sbr.rel (%p1345) target = $region32
      $region31: #{stft_encoder.1} parent=27 // pred_region
        _
      $region32: #{stft_encoder.1} parent=27 // pred_fallthru
        _
    $region28: #{stft_encoder.1} parent=5 // pred_fallthru
      _
    %p1348 = scmp.le.s32.totalorder 2, %s8
    // Predicated region
    $region33: #{stft_encoder.1} parent=5 // pred_check
      %p1349 = pneg %p1348
    $region34: #{stft_encoder.1} parent=5 // pred_check_branch
      %1351 = sbr.rel (%p1349) target = $region36
    $region35: #{stft_encoder.1} parent=5 // pred_region
      %s1352 = ssub.s32 %s8, 2
      // Predicated region
      $region37: #{stft_encoder.1} parent=35 // pred_check
        %p1353 = pneg %p100
      $region38: #{stft_encoder.1} parent=35 // pred_check_branch
        %1355 = sbr.rel (%p1353) target = $region40
      $region39: #{stft_encoder.1} parent=35 // pred_region
        %p1356 = scmp.lt.s32.totalorder %s19, 1
        %s1357 = scalar_select %p1356, %s19, 1
        %p1358 = scmp.lt.s32.totalorder %s20, 0
        %s1359 = scalar_select %p1358, %s20, 0
        %s1360 = smul.addr %s1357, 64
        %s1361 = sadd.s32 %s1359, %s1360
        %s1362 = smul.addr %s1361, 8
        %s1363 = scalar_lea.vmem %s2, %s1362
      $region40: #{stft_encoder.1} parent=35 // pred_fallthru
        _
    $region36: #{stft_encoder.1} parent=5 // pred_fallthru
      _
  $region6: #{stft_encoder.1} parent=0 // loop_footer
    %s12 = sadd.s32 1, %s8
  $region7: #{stft_encoder.1} parent=0 // loop_footer_branch
    %7 = sbr.rel target = $region3
  $region8: #{stft_encoder.1} parent=0 // loop_exit
    _

</llo_original>
